<compile_context>
chip_gen: v7x
topology: tpu7x:2x2x1
jax: 0.10.0
libtpu: 0.0.40
codegen_flags: <defaults>
</compile_context>

<pallas_src>
from functools import partial

import numpy as np
import jax
import jax.numpy as jnp
from jax.experimental import pallas as pl
from jax.experimental.pallas import tpu as pltpu

K = 5      # conv kernel size
S = 2      # conv stride
H0 = 28    # input spatial size
H1 = 12    # spatial size after conv1
H2 = 4     # spatial size after conv2
C1 = 4     # conv1 out channels
C2 = 4     # conv2 out channels
D0 = H0 * H0          # 784  flattened input per sample
D1 = C1 * H1 * H1     # 576  flattened conv1 activation (NCHW order)
D2 = C2 * H2 * H2     # 64   flattened conv2 activation (NCHW order, = fc input)


# ---------------------------------------------------------------------------
# Fused kernel: conv1+relu -> conv2+relu -> fc for one batch tile.
# Everything stays in VMEM/vregs; three MXU matmuls, f32 accumulation.
#   x  : (tb, 784)  bf16       w1 : (784, 576) bf16    b1 : (1, 576) f32
#   y1 : (tb, 576)  f32        w2 : (576,  64) bf16    b2 : (1,  64) f32
#   y2 : (tb,  64)  f32        wfc: ( 64, 128) bf16    bfc: (1, 128) f32
#   out: (tb, 128)  f32   (lane-dense padded logits)
# ---------------------------------------------------------------------------
def _fused_kernel(x_ref, w1_ref, b1_ref, w2_ref, b2_ref, wfc_ref, bfc_ref, out_ref):
    y1 = jnp.dot(x_ref[...], w1_ref[...], preferred_element_type=jnp.float32)
    y1 = jnp.maximum(y1 + b1_ref[...], 0.0)                        # (tb, 576) f32

    y2 = jnp.dot(y1.astype(w2_ref.dtype), w2_ref[...],
                 preferred_element_type=jnp.float32)
    y2 = jnp.maximum(y2 + b2_ref[...], 0.0)                        # (tb, 64) f32

    logits = jnp.dot(y2.astype(wfc_ref.dtype), wfc_ref[...],
                     preferred_element_type=jnp.float32)
    out_ref[...] = (logits + bfc_ref[...]).astype(out_ref.dtype)   # (tb, 128)


# ---------------------------------------------------------------------------
# One-time host-side folding of the PyTorch-layout weights into dense matrices.
# ---------------------------------------------------------------------------
def prepare_params(params, num_classes, compute_dtype=jnp.bfloat16):
    w1 = np.asarray(params["w1"], np.float32)      # (4,1,5,5)  OIHW
    w2 = np.asarray(params["w2"], np.float32)      # (4,4,5,5)  OIHW
    w_fc = np.asarray(params["w_fc"], np.float32)  # (nc, 64)
    b1 = np.asarray(params["b1"], np.float32)
    b2 = np.asarray(params["b2"], np.float32)
    b_fc = np.asarray(params["b_fc"], np.float32)

    nc_pad = max(128, ((num_classes + 127) // 128) * 128)   # lane-dense output

    # conv1 as (784, 576): W1[r*28+c, oc*144+oh*12+ow] = w1[oc,0,kh,kw]
    # with r = 2*oh+kh, c = 2*ow+kw (stride-2 VALID conv, 28 -> 12).
    W1 = np.zeros((D0, D1), np.float32)
    for oc in range(C1):
        for oh in range(H1):
            for ow in range(H1):
                col = oc * H1 * H1 + oh * H1 + ow
                for kh in range(K):
                    for kw in range(K):
                        W1[(S * oh + kh) * H0 + (S * ow + kw), col] = w1[oc, 0, kh, kw]

    # conv2 as (576, 64): W2[ic*144+r*12+c, oc*16+oh*4+ow] = w2[oc,ic,kh,kw] (12 -> 4).
    W2 = np.zeros((D1, D2), np.float32)
    for oc in range(C2):
        for oh in range(H2):
            for ow in range(H2):
                col = oc * H2 * H2 + oh * H2 + ow
                for ic in range(C1):
                    for kh in range(K):
                        for kw in range(K):
                            W2[ic * H1 * H1 + (S * oh + kh) * H1 + (S * ow + kw),
                               col] = w2[oc, ic, kh, kw]

    # y2 columns already follow torch's NCHW flatten (oc*16 + oh*4 + ow),
    # so the fc is simply w_fc.T, padded to 128 output lanes.
    Wfc = np.zeros((D2, nc_pad), np.float32)
    Wfc[:, :num_classes] = w_fc.T

    b1d = np.repeat(b1, H1 * H1)[None, :]            # (1, 576)
    b2d = np.repeat(b2, H2 * H2)[None, :]            # (1, 64)
    bfcd = np.zeros((1, nc_pad), np.float32)
    bfcd[0, :num_classes] = b_fc

    return dict(
        w1=jnp.asarray(W1, compute_dtype),  b1=jnp.asarray(b1d, jnp.float32),
        w2=jnp.asarray(W2, compute_dtype),  b2=jnp.asarray(b2d, jnp.float32),
        wfc=jnp.asarray(Wfc, compute_dtype), bfc=jnp.asarray(bfcd, jnp.float32),
    )


@partial(jax.jit, static_argnames=("num_classes", "tile_batch"))
def baseline_forward(x, prep, *, num_classes, tile_batch=128):
    """x: (B, 784) float32 (anything reshapeable to (B, 1, 28, 28))."""
    batch = x.shape[0]
    assert tile_batch % 8 == 0, "tile_batch must be a multiple of 8 (sublane tiling)"
    steps = (batch + tile_batch - 1) // tile_batch
    padded = steps * tile_batch

    compute_dtype = prep["w1"].dtype
    x2d = x.reshape(batch, D0).astype(compute_dtype)
    if padded != batch:                               # remainder tile -> zero pad
        x2d = jnp.pad(x2d, ((0, padded - batch), (0, 0)))

    nc_pad = prep["bfc"].shape[1]

    def const_spec(a):        # resident constant: same block for every grid step
        return pl.BlockSpec(a.shape, lambda i, nd=a.ndim: (0,) * nd)

    # Advisory cost estimate: 3 matmuls per sample; constants counted once
    # (they are resident across the grid, not re-fetched per step).
    flops = 2 * padded * (D0 * D1 + D1 * D2 + D2 * nc_pad)
    const_bytes = sum(int(np.prod(v.shape)) * v.dtype.itemsize for v in prep.values())
    bytes_accessed = int(x2d.size * x2d.dtype.itemsize
                         + padded * nc_pad * 4 + const_bytes)

    out_padded = pl.pallas_call(
        _fused_kernel,
        out_shape=jax.ShapeDtypeStruct((padded, nc_pad), jnp.float32),
        grid=(steps,),
        in_specs=[
            pl.BlockSpec((tile_batch, D0), lambda i: (i, 0)),    # batch-tiled input
            const_spec(prep["w1"]), const_spec(prep["b1"]),
            const_spec(prep["w2"]), const_spec(prep["b2"]),
            const_spec(prep["wfc"]), const_spec(prep["bfc"]),
        ],
        out_specs=pl.BlockSpec((tile_batch, nc_pad), lambda i: (i, 0)),
        compiler_params=pltpu.CompilerParams(dimension_semantics=("parallel",)),
        cost_estimate=pl.CostEstimate(flops=int(flops), transcendentals=0,
                                      bytes_accessed=bytes_accessed),
    )(x2d, prep["w1"], prep["b1"], prep["w2"], prep["b2"],
      prep["wfc"], prep["bfc"])

    return out_padded[:batch, :num_classes]


def init_params(key, num_classes):
    k1, k2, k3 = jax.random.split(key, 3)
    # Same shapes as the PyTorch module; deterministic synthetic init.
    w1 = 0.1 * jax.random.normal(k1, (4, 1, 5, 5), jnp.float32)         # Conv2d(1,4,5,2)
    b1 = jnp.linspace(-0.1, 0.1, 4).astype(jnp.float32)
    w2 = 0.1 * jax.random.normal(k2, (4, 4, 5, 5), jnp.float32)         # Conv2d(4,4,5,2)
    b2 = jnp.linspace(-0.05, 0.05, 4).astype(jnp.float32)
    w_fc = 0.1 * jax.random.normal(k3, (num_classes, 64), jnp.float32)  # Linear(64, nc)
    b_fc = jnp.linspace(-0.02, 0.02, num_classes).astype(jnp.float32)
    return dict(w1=w1, b1=b1, w2=w2, b2=b2, w_fc=w_fc, b_fc=b_fc)


def reference_forward(x, params):
    """Pure-JAX f32 reference (matches the PyTorch forward semantics)."""
    B = x.shape[0]
    xi = x.reshape(B, 1, 28, 28)
    dn = ("NCHW", "OIHW", "NCHW")
    y = jax.lax.conv_general_dilated(xi, params["w1"], (2, 2), "VALID",
                                     dimension_numbers=dn)
    y = jnp.maximum(y + params["b1"][None, :, None, None], 0.0)
    y = jax.lax.conv_general_dilated(y, params["w2"], (2, 2), "VALID",
                                     dimension_numbers=dn)
    y = jnp.maximum(y + params["b2"][None, :, None, None], 0.0)
    y = y.reshape(B, -1)
    return y @ params["w_fc"].T + params["b_fc"]


if __name__ == "__main__":
    num_classes = 10
    batch = 32           # small demo batch; tile_batch=128-256 recommended at scale
    tile_batch = 8       # 4 grid steps -> both v7x TensorCores get pipelined work

    key = jax.random.PRNGKey(0)
    kx, kp = jax.random.split(key)
    x = jax.random.normal(kx, (batch, 784), jnp.float32)   # flattened 28x28 images
    params = init_params(kp, num_classes)

    prep = prepare_params(params, num_classes)              # one-time weight folding
    out = jax.block_until_ready(
        baseline_forward(x, prep, num_classes=num_classes, tile_batch=tile_batch))
    ref = reference_forward(x, params)

    assert out.shape == (batch, num_classes), out.shape
    # bf16 MXU operands with f32 accumulation -> loose tolerance vs. f32 reference.
    assert jnp.allclose(out, ref, atol=3e-2, rtol=3e-2), \
        float(jnp.max(jnp.abs(out - ref)))
    print("KERNEL_OK")
</pallas_src>

<mosaic_0001>
module attributes {stable_mosaic.version = 11 : i64} {
  func.func @_fused_kernel(%arg0: i32, %arg1: memref<8x784xbf16, #tpu.memory_space<vmem>>, %arg2: memref<784x576xbf16, #tpu.memory_space<vmem>>, %arg3: memref<1x576xf32, #tpu.memory_space<vmem>>, %arg4: memref<576x64xbf16, #tpu.memory_space<vmem>>, %arg5: memref<1x64xf32, #tpu.memory_space<vmem>>, %arg6: memref<64x128xbf16, #tpu.memory_space<vmem>>, %arg7: memref<1x128xf32, #tpu.memory_space<vmem>>, %arg8: memref<8x128xf32, #tpu.memory_space<vmem>>) attributes {dimension_semantics = [#tpu.dimension_semantics<parallel>], iteration_bounds = array<i64: 4>, scalar_prefetch = 0 : i64, scratch_operands = 0 : i64, tpu.core_type = #tpu.core_type<tc>, window_params = [{transform_indices = @transform_0, window_bounds = array<i64: 8, 784>}, {pipeline_mode = #tpu.pipeline_mode<synchronous>, transform_indices = @transform_1, window_bounds = array<i64: 784, 576>}, {pipeline_mode = #tpu.pipeline_mode<synchronous>, transform_indices = @transform_2, window_bounds = array<i64: 1, 576>}, {pipeline_mode = #tpu.pipeline_mode<synchronous>, transform_indices = @transform_3, window_bounds = array<i64: 576, 64>}, {pipeline_mode = #tpu.pipeline_mode<synchronous>, transform_indices = @transform_4, window_bounds = array<i64: 1, 64>}, {pipeline_mode = #tpu.pipeline_mode<synchronous>, transform_indices = @transform_5, window_bounds = array<i64: 64, 128>}, {pipeline_mode = #tpu.pipeline_mode<synchronous>, transform_indices = @transform_6, window_bounds = array<i64: 1, 128>}, {transform_indices = @transform_7, window_bounds = array<i64: 8, 128>}]} {
    %c0 = arith.constant 0 : index
    %c0_0 = arith.constant 0 : index
    %0 = vector.load %arg1[%c0, %c0_0] : memref<8x784xbf16, #tpu.memory_space<vmem>>, vector<8x784xbf16>
    %c0_1 = arith.constant 0 : index
    %c0_2 = arith.constant 0 : index
    %1 = vector.load %arg2[%c0_1, %c0_2] : memref<784x576xbf16, #tpu.memory_space<vmem>>, vector<784x576xbf16>
    %cst = arith.constant dense<0.000000e+00> : vector<8x576xf32>
    %2 = tpu.matmul %0, %1, %cst {dimension_numbers = #tpu.dot_dimension_numbers<[1], [0], [0], [1], [0, 0, 1, 1], [], []>} : vector<8x784xbf16>, vector<784x576xbf16>, vector<8x576xf32> -> vector<8x576xf32>
    %c0_3 = arith.constant 0 : index
    %c0_4 = arith.constant 0 : index
    %3 = vector.load %arg3[%c0_3, %c0_4] : memref<1x576xf32, #tpu.memory_space<vmem>>, vector<1x576xf32>
    %4 = vector.broadcast %3 : vector<1x576xf32> to vector<8x576xf32>
    %5 = arith.addf %2, %4 : vector<8x576xf32>
    %cst_5 = arith.constant 0.000000e+00 : f32
    %6 = vector.broadcast %cst_5 : f32 to vector<8x576xf32>
    %7 = arith.maximumf %5, %6 : vector<8x576xf32>
    %8 = arith.truncf %7 : vector<8x576xf32> to vector<8x576xbf16>
    %c0_6 = arith.constant 0 : index
    %c0_7 = arith.constant 0 : index
    %9 = vector.load %arg4[%c0_6, %c0_7] : memref<576x64xbf16, #tpu.memory_space<vmem>>, vector<576x64xbf16>
    %cst_8 = arith.constant dense<0.000000e+00> : vector<8x64xf32>
    %10 = tpu.matmul %8, %9, %cst_8 {dimension_numbers = #tpu.dot_dimension_numbers<[1], [0], [0], [1], [0, 0, 1, 1], [], []>} : vector<8x576xbf16>, vector<576x64xbf16>, vector<8x64xf32> -> vector<8x64xf32>
    %c0_9 = arith.constant 0 : index
    %c0_10 = arith.constant 0 : index
    %11 = vector.load %arg5[%c0_9, %c0_10] : memref<1x64xf32, #tpu.memory_space<vmem>>, vector<1x64xf32>
    %12 = vector.broadcast %11 : vector<1x64xf32> to vector<8x64xf32>
    %13 = arith.addf %10, %12 : vector<8x64xf32>
    %cst_11 = arith.constant 0.000000e+00 : f32
    %14 = vector.broadcast %cst_11 : f32 to vector<8x64xf32>
    %15 = arith.maximumf %13, %14 : vector<8x64xf32>
    %16 = arith.truncf %15 : vector<8x64xf32> to vector<8x64xbf16>
    %c0_12 = arith.constant 0 : index
    %c0_13 = arith.constant 0 : index
    %17 = vector.load %arg6[%c0_12, %c0_13] : memref<64x128xbf16, #tpu.memory_space<vmem>>, vector<64x128xbf16>
    %cst_14 = arith.constant dense<0.000000e+00> : vector<8x128xf32>
    %18 = tpu.matmul %16, %17, %cst_14 {dimension_numbers = #tpu.dot_dimension_numbers<[1], [0], [0], [1], [0, 0, 1, 1], [], []>} : vector<8x64xbf16>, vector<64x128xbf16>, vector<8x128xf32> -> vector<8x128xf32>
    %c0_15 = arith.constant 0 : index
    %c0_16 = arith.constant 0 : index
    %19 = vector.load %arg7[%c0_15, %c0_16] : memref<1x128xf32, #tpu.memory_space<vmem>>, vector<1x128xf32>
    %20 = vector.broadcast %19 : vector<1x128xf32> to vector<8x128xf32>
    %21 = arith.addf %18, %20 : vector<8x128xf32>
    %c0_17 = arith.constant 0 : index
    %c0_18 = arith.constant 0 : index
    %22 = vector.load %arg8[%c0_17, %c0_18] : memref<8x128xf32, #tpu.memory_space<vmem>>, vector<8x128xf32>
    tpu.vector_store %arg8[%c0_17, %c0_18], %21 {strides = array<i32>} : memref<8x128xf32, #tpu.memory_space<vmem>>, vector<8x128xf32>,
    return
  }
  func.func @transform_0(%arg0: i32) -> (i32, i32) {
    %c0_i32 = arith.constant 0 : i32
    %c0_i32_0 = arith.constant 0 : i32
    return %arg0, %c0_i32 : i32, i32
  }
  func.func @transform_1(%arg0: i32) -> (i32, i32) {
    %c0_i32 = arith.constant 0 : i32
    %c0_i32_0 = arith.constant 0 : i32
    %c0_i32_1 = arith.constant 0 : i32
    return %c0_i32, %c0_i32_0 : i32, i32
  }
  func.func @transform_2(%arg0: i32) -> (i32, i32) {
    %c0_i32 = arith.constant 0 : i32
    %c0_i32_0 = arith.constant 0 : i32
    %c0_i32_1 = arith.constant 0 : i32
    return %c0_i32, %c0_i32_0 : i32, i32
  }
  func.func @transform_3(%arg0: i32) -> (i32, i32) {
    %c0_i32 = arith.constant 0 : i32
    %c0_i32_0 = arith.constant 0 : i32
    %c0_i32_1 = arith.constant 0 : i32
    return %c0_i32, %c0_i32_0 : i32, i32
  }
  func.func @transform_4(%arg0: i32) -> (i32, i32) {
    %c0_i32 = arith.constant 0 : i32
    %c0_i32_0 = arith.constant 0 : i32
    %c0_i32_1 = arith.constant 0 : i32
    return %c0_i32, %c0_i32_0 : i32, i32
  }
  func.func @transform_5(%arg0: i32) -> (i32, i32) {
    %c0_i32 = arith.constant 0 : i32
    %c0_i32_0 = arith.constant 0 : i32
    %c0_i32_1 = arith.constant 0 : i32
    return %c0_i32, %c0_i32_0 : i32, i32
  }
  func.func @transform_6(%arg0: i32) -> (i32, i32) {
    %c0_i32 = arith.constant 0 : i32
    %c0_i32_0 = arith.constant 0 : i32
    %c0_i32_1 = arith.constant 0 : i32
    return %c0_i32, %c0_i32_0 : i32, i32
  }
  func.func @transform_7(%arg0: i32) -> (i32, i32) {
    %c0_i32 = arith.constant 0 : i32
    %c0_i32_0 = arith.constant 0 : i32
    return %arg0, %c0_i32 : i32, i32
  }
}

</mosaic_0001>

<llo_original>
// kernel: baseline_forward.1
$region0: #{baseline_forward.1}
  #allocation0 [shape = 'u32[]', space=smem, size = 0x4, offset = 0x4, fixed_abs, tag = 'smem constant byte address 0x4 - core index']
  #allocation1 [shape = 'u32[144,128]{1,0:T(1,128)}', space=vmem, size = 0x12000, scoped, tag = 'internal scratch']
  %s0 = inlined_call_operand.vmem [shape: bf16[32,784], index: 0, kind: input, shape index: {}]
  %s1 = inlined_call_operand.hbm [shape: bf16[784,576], index: 1, kind: input, shape index: {}]
  %s2 = inlined_call_operand.vmem [shape: f32[1,576], index: 2, kind: input, shape index: {}]
  %s3 = inlined_call_operand.vmem [shape: bf16[576,64], index: 3, kind: input, shape index: {}]
  %s4 = inlined_call_operand.vmem [shape: f32[1,64], index: 4, kind: input, shape index: {}]
  %s5 = inlined_call_operand.vmem [shape: bf16[64,128], index: 5, kind: input, shape index: {}]
  %s6 = inlined_call_operand.vmem [shape: f32[1,128], index: 6, kind: input, shape index: {}]
  %s7 = inlined_call_operand.vmem [shape: f32[32,128], index: 7, kind: output, shape index: {}]
  %s8 = sld [smem:[#allocation0]]
  $region65: #{baseline_forward.1} parent=0
    _
  %s10 = ssub.s32 1, %s8
  %s11 = scalar_select 0, %s10, %s8
  $region1: #{baseline_forward.1} parent=0
    #allocation2 [shape = 'u8[1003520]{0}', space=vmem, size = 0xf5000, scoped, tag = 'input window, operand 1, single buffered']
    #allocation3 [shape = 's32[2]{0}', space=sflag, size = 0x8, scoped, tag = 'scoped memory for baseline_forward.1']
    %12 = vsyncpa [#allocation3], 0
    loop: start=0, step=1, limit=6
    $region2: #{baseline_forward.1} parent=1 // loop_pre_header
      _
    $region3: #{baseline_forward.1} parent=1 // loop_header
      %s14 = sphi 0, %s18
      %p15 = scmp.ge.s32.totalorder %s14, 6
      %s24 = sphi 0, %s26
      %s27 = sphi 0, %s24
      %s28 = sphi 0, %s27
      %s44 = sphi 0, %s28
      %s48 = sphi 0, %s48
      %s50 = sphi 0, %s48
      %s51 = sphi 0, %s50
      %s65 = sphi 0, %s51
      %s69 = sphi 0, %s69
      %s71 = sphi 0, %s69
      %s72 = sphi 0, %s71
      %s86 = sphi 0, %s72
      %s90 = sphi 0, %s90
      %s92 = sphi 0, %s90
      %s93 = sphi 0, %s92
      %s107 = sphi 0, %s93
      %s111 = sphi 0, %s111
      %s113 = sphi 0, %s111
      %s114 = sphi 0, %s113
      %s128 = sphi 0, %s114
      %s132 = sphi 0, %s132
      %s134 = sphi 0, %s132
      %s135 = sphi 0, %s134
      %s149 = sphi 0, %s135
      %s153 = sphi 0, %s153
      %s155 = sphi 0, %s153
      %s156 = sphi 0, %s155
      %s170 = sphi 0, %s156
      %s176 = sphi 0, %s178
      %s179 = sphi 0, %s176
      %s180 = sphi 0, %s179
      %s196 = sphi 0, %s180
    $region4: #{baseline_forward.1} parent=1 // loop_header_branch
      %17 = sbr.rel (%p15) target = $region8
    $region5: #{baseline_forward.1} parent=1 // loop_body
      %s19 = ssub.s32 %s14, 1
      %s20 = ssub.s32 %s14, 2
      %s21 = sadd.s32 %s14, 1
      %s22 = ssub.s32 %s14, %s21
      %p23 = scmp.eq.s32.totalorder %s22, 0
      %s25 = sadd.s32 %s24, 1
      %s26 = scalar_select %p23, %s24, %s25
      %p29 = pneg %p23
      %p30 = scmp.eq.s32.totalorder %s14, 3
      %p31 = por %p29, %p30
      %p32 = scmp.ne.s32.totalorder %s24, %s27
      %p33 = scmp.eq.s32.totalorder %s14, 0
      %p34 = por %p32, %p33
      %p35 = scmp.ne.s32.totalorder %s24, %s27
      %p36 = scmp.eq.s32.totalorder %s19, 3
      %p37 = por %p35, %p36
      %p38 = scmp.ne.s32.totalorder %s27, %s28
      %p39 = scmp.eq.s32.totalorder %s19, 0
      %p40 = por %p38, %p39
      %p41 = scmp.ne.s32.totalorder %s27, %s28
      %p42 = scmp.eq.s32.totalorder %s20, 3
      %p43 = por %p41, %p42
      %p45 = scmp.ne.s32.totalorder %s28, %s44
      %p46 = scmp.eq.s32.totalorder %s20, 0
      %p47 = por %p45, %p46
      %s49 = sadd.s32 %s48, 1
      %p52 = scmp.eq.s32.totalorder %s14, 3
      %p53 = scmp.ne.s32.totalorder %s48, %s50
      %p54 = scmp.eq.s32.totalorder %s14, 0
      %p55 = por %p53, %p54
      %p56 = scmp.ne.s32.totalorder %s48, %s50
      %p57 = scmp.eq.s32.totalorder %s19, 3
      %p58 = por %p56, %p57
      %p59 = scmp.ne.s32.totalorder %s50, %s51
      %p60 = scmp.eq.s32.totalorder %s19, 0
      %p61 = por %p59, %p60
      %p62 = scmp.ne.s32.totalorder %s50, %s51
      %p63 = scmp.eq.s32.totalorder %s20, 3
      %p64 = por %p62, %p63
      %p66 = scmp.ne.s32.totalorder %s51, %s65
      %p67 = scmp.eq.s32.totalorder %s20, 0
      %p68 = por %p66, %p67
      %s70 = sadd.s32 %s69, 1
      %p73 = scmp.eq.s32.totalorder %s14, 3
      %p74 = scmp.ne.s32.totalorder %s69, %s71
      %p75 = scmp.eq.s32.totalorder %s14, 0
      %p76 = por %p74, %p75
      %p77 = scmp.ne.s32.totalorder %s69, %s71
      %p78 = scmp.eq.s32.totalorder %s19, 3
      %p79 = por %p77, %p78
      %p80 = scmp.ne.s32.totalorder %s71, %s72
      %p81 = scmp.eq.s32.totalorder %s19, 0
      %p82 = por %p80, %p81
      %p83 = scmp.ne.s32.totalorder %s71, %s72
      %p84 = scmp.eq.s32.totalorder %s20, 3
      %p85 = por %p83, %p84
      %p87 = scmp.ne.s32.totalorder %s72, %s86
      %p88 = scmp.eq.s32.totalorder %s20, 0
      %p89 = por %p87, %p88
      %s91 = sadd.s32 %s90, 1
      %p94 = scmp.eq.s32.totalorder %s14, 3
      %p95 = scmp.ne.s32.totalorder %s90, %s92
      %p96 = scmp.eq.s32.totalorder %s14, 0
      %p97 = por %p95, %p96
      %p98 = scmp.ne.s32.totalorder %s90, %s92
      %p99 = scmp.eq.s32.totalorder %s19, 3
      %p100 = por %p98, %p99
      %p101 = scmp.ne.s32.totalorder %s92, %s93
      %p102 = scmp.eq.s32.totalorder %s19, 0
      %p103 = por %p101, %p102
      %p104 = scmp.ne.s32.totalorder %s92, %s93
      %p105 = scmp.eq.s32.totalorder %s20, 3
      %p106 = por %p104, %p105
      %p108 = scmp.ne.s32.totalorder %s93, %s107
      %p109 = scmp.eq.s32.totalorder %s20, 0
      %p110 = por %p108, %p109
      %s112 = sadd.s32 %s111, 1
      %p115 = scmp.eq.s32.totalorder %s14, 3
      %p116 = scmp.ne.s32.totalorder %s111, %s113
      %p117 = scmp.eq.s32.totalorder %s14, 0
      %p118 = por %p116, %p117
      %p119 = scmp.ne.s32.totalorder %s111, %s113
      %p120 = scmp.eq.s32.totalorder %s19, 3
      %p121 = por %p119, %p120
      %p122 = scmp.ne.s32.totalorder %s113, %s114
      %p123 = scmp.eq.s32.totalorder %s19, 0
      %p124 = por %p122, %p123
      %p125 = scmp.ne.s32.totalorder %s113, %s114
      %p126 = scmp.eq.s32.totalorder %s20, 3
      %p127 = por %p125, %p126
      %p129 = scmp.ne.s32.totalorder %s114, %s128
      %p130 = scmp.eq.s32.totalorder %s20, 0
      %p131 = por %p129, %p130
      %s133 = sadd.s32 %s132, 1
      %p136 = scmp.eq.s32.totalorder %s14, 3
      %p137 = scmp.ne.s32.totalorder %s132, %s134
      %p138 = scmp.eq.s32.totalorder %s14, 0
      %p139 = por %p137, %p138
      %p140 = scmp.ne.s32.totalorder %s132, %s134
      %p141 = scmp.eq.s32.totalorder %s19, 3
      %p142 = por %p140, %p141
      %p143 = scmp.ne.s32.totalorder %s134, %s135
      %p144 = scmp.eq.s32.totalorder %s19, 0
      %p145 = por %p143, %p144
      %p146 = scmp.ne.s32.totalorder %s134, %s135
      %p147 = scmp.eq.s32.totalorder %s20, 3
      %p148 = por %p146, %p147
      %p150 = scmp.ne.s32.totalorder %s135, %s149
      %p151 = scmp.eq.s32.totalorder %s20, 0
      %p152 = por %p150, %p151
      %s154 = sadd.s32 %s153, 1
      %p157 = scmp.eq.s32.totalorder %s14, 3
      %p158 = scmp.ne.s32.totalorder %s153, %s155
      %p159 = scmp.eq.s32.totalorder %s14, 0
      %p160 = por %p158, %p159
      %p161 = scmp.ne.s32.totalorder %s153, %s155
      %p162 = scmp.eq.s32.totalorder %s19, 3
      %p163 = por %p161, %p162
      %p164 = scmp.ne.s32.totalorder %s155, %s156
      %p165 = scmp.eq.s32.totalorder %s19, 0
      %p166 = por %p164, %p165
      %p167 = scmp.ne.s32.totalorder %s155, %s156
      %p168 = scmp.eq.s32.totalorder %s20, 3
      %p169 = por %p167, %p168
      %p171 = scmp.ne.s32.totalorder %s156, %s170
      %p172 = scmp.eq.s32.totalorder %s20, 0
      %p173 = por %p171, %p172
      %s174 = ssub.s32 %s14, %s21
      %p175 = scmp.eq.s32.totalorder %s174, 0
      %s177 = sadd.s32 %s176, 1
      %s178 = scalar_select %p175, %s176, %s177
      %p181 = pneg %p175
      %p182 = scmp.eq.s32.totalorder %s14, 3
      %p183 = por %p181, %p182
      %p184 = scmp.ne.s32.totalorder %s176, %s179
      %p185 = scmp.eq.s32.totalorder %s14, 0
      %p186 = por %p184, %p185
      %p187 = scmp.ne.s32.totalorder %s176, %s179
      %p188 = scmp.eq.s32.totalorder %s19, 3
      %p189 = por %p187, %p188
      %p190 = scmp.ne.s32.totalorder %s179, %s180
      %p191 = scmp.eq.s32.totalorder %s19, 0
      %p192 = por %p190, %p191
      %p193 = scmp.ne.s32.totalorder %s179, %s180
      %p194 = scmp.eq.s32.totalorder %s20, 3
      %p195 = por %p193, %p194
      %p197 = scmp.ne.s32.totalorder %s180, %s196
      %p198 = scmp.eq.s32.totalorder %s20, 0
      %p199 = por %p197, %p198
      %p200 = scmp.le.s32.totalorder 1, %s14
      %p201 = scmp.lt.s32.totalorder %s14, 5
      %p202 = pnand %p200, %p201
      %p203 = pneg %p202
      // Predicated region
      $region9: #{baseline_forward.1} parent=5 // pred_check
        _
      $region10: #{baseline_forward.1} parent=5 // pred_check_branch
        %205 = sbr.rel (%p202) target = $region12
      $region11: #{baseline_forward.1} parent=5 // pred_region
        %s206 = ssub.s32 %s14, 1
        // Predicated region
        $region13: #{baseline_forward.1} parent=11 // pred_check
          %p207 = pneg %p61
        $region14: #{baseline_forward.1} parent=11 // pred_check_branch
          %209 = sbr.rel (%p207) target = $region16
        $region15: #{baseline_forward.1} parent=11 // pred_region
          %s211 = ssub.s32 31360, 31360
          %212 = vsyncadd [#allocation3], %s211
          %s213 = sshll.u32 [#allocation2], 4
          %s214 = int_to_ptr.vmem [resolvable:$true] %s213
          %219 = dma.hbm_to_vmem [thread:$0]  %s1, 31360, %s214, [#allocation3], 320, 320, 20
        $region16: #{baseline_forward.1} parent=11 // pred_fallthru
          _
        // Predicated region
        $region17: #{baseline_forward.1} parent=11 // pred_check
          %p220 = pneg %p82
        $region18: #{baseline_forward.1} parent=11 // pred_check_branch
          %222 = sbr.rel (%p220) target = $region20
        $region19: #{baseline_forward.1} parent=11 // pred_region
          _
        $region20: #{baseline_forward.1} parent=11 // pred_fallthru
          _
        // Predicated region
        $region21: #{baseline_forward.1} parent=11 // pred_check
          %p223 = pneg %p103
        $region22: #{baseline_forward.1} parent=11 // pred_check_branch
          %225 = sbr.rel (%p223) target = $region24
        $region23: #{baseline_forward.1} parent=11 // pred_region
          _
        $region24: #{baseline_forward.1} parent=11 // pred_fallthru
          _
        // Predicated region
        $region25: #{baseline_forward.1} parent=11 // pred_check
          %p226 = pneg %p124
        $region26: #{baseline_forward.1} parent=11 // pred_check_branch
          %228 = sbr.rel (%p226) target = $region28
        $region27: #{baseline_forward.1} parent=11 // pred_region
          _
        $region28: #{baseline_forward.1} parent=11 // pred_fallthru
          _
        // Predicated region
        $region29: #{baseline_forward.1} parent=11 // pred_check
          %p229 = pneg %p145
        $region30: #{baseline_forward.1} parent=11 // pred_check_branch
          %231 = sbr.rel (%p229) target = $region32
        $region31: #{baseline_forward.1} parent=11 // pred_region
          _
        $region32: #{baseline_forward.1} parent=11 // pred_fallthru
          _
        // Predicated region
        $region33: #{baseline_forward.1} parent=11 // pred_check
          %p232 = pneg %p166
        $region34: #{baseline_forward.1} parent=11 // pred_check_branch
          %234 = sbr.rel (%p232) target = $region36
        $region35: #{baseline_forward.1} parent=11 // pred_region
          _
        $region36: #{baseline_forward.1} parent=11 // pred_fallthru
          _
      $region12: #{baseline_forward.1} parent=5 // pred_fallthru
        _
      %p235 = scmp.lt.s32.totalorder %s14, 4
      // Predicated region
      $region37: #{baseline_forward.1} parent=5 // pred_check
        %p236 = pneg %p235
      $region38: #{baseline_forward.1} parent=5 // pred_check_branch
        %238 = sbr.rel (%p236) target = $region40
      $region39: #{baseline_forward.1} parent=5 // pred_region
        // Predicated region
        $region41: #{baseline_forward.1} parent=39 // pred_check
          %p239 = pneg %p34
        $region42: #{baseline_forward.1} parent=39 // pred_check_branch
          %241 = sbr.rel (%p239) target = $region44
        $region43: #{baseline_forward.1} parent=39 // pred_region
          %p242 = scmp.lt.s32.totalorder %s14, 3
          %s243 = scalar_select %p242, %s14, 3
          %s244 = smul.addr %s243, 7
          %s245 = smul.addr %s244, 4
          %s246 = scalar_lea.vmem %s0, %s245
        $region44: #{baseline_forward.1} parent=39 // pred_fallthru
          _
      $region40: #{baseline_forward.1} parent=5 // pred_fallthru
        _
      %p247 = scmp.le.s32.totalorder 1, %s14
      %p248 = scmp.lt.s32.totalorder %s14, 5
      %p249 = pnand %p247, %p248
      %p250 = pneg %p249
      // Predicated region
      $region45: #{baseline_forward.1} parent=5 // pred_check
        _
      $region46: #{baseline_forward.1} parent=5 // pred_check_branch
        %252 = sbr.rel (%p249) target = $region48
      $region47: #{baseline_forward.1} parent=5 // pred_region
        %s253 = ssub.s32 %s14, 1
        // Predicated region
        $region49: #{baseline_forward.1} parent=47 // pred_check
          %p254 = pneg %p61
        $region50: #{baseline_forward.1} parent=47 // pred_check_branch
          %256 = sbr.rel (%p254) target = $region52
        $region51: #{baseline_forward.1} parent=47 // pred_region
          %257 = dma.done [#allocation3], 31360
        $region52: #{baseline_forward.1} parent=47 // pred_fallthru
          _
        %p258 = scmp.lt.s32.totalorder %s19, 3
        %s259 = scalar_select %p258, %s19, 3
        %s260 = smul.addr %s259, 7
        %s261 = smul.addr %s260, 4
        %s262 = scalar_lea.vmem %s0, %s261
        %p263 = pneg %p40
        %p264 = pneg %p37
        %p265 = pneg %p61
        %p266 = pneg %p58
        %p267 = pneg %p82
        %p268 = pneg %p79
        %p269 = pneg %p103
        %p270 = pneg %p100
        %p271 = pneg %p124
        %p272 = pneg %p121
        %p273 = pneg %p145
        %p274 = pneg %p142
        %p275 = pneg %p166
        %p276 = pneg %p163
        %p277 = pneg %p192
        %p278 = pneg %p189
        %p279 = scmp.lt.s32.totalorder %s19, 3
        %s280 = scalar_select %p279, %s19, 3
        %s281 = smul.addr %s280, 8
        %s282 = scalar_lea.vmem %s7, %s281
        %p283 = scmp.lt.s32.totalorder %s19, 3
        %s284 = scalar_select %p283, %s19, 3
        %s285 = smul.addr %s284, 7
        %s286 = smul.addr %s285, 4
        %s287 = scalar_lea.vmem %s0, %s286
        %p288 = scmp.lt.s32.totalorder %s19, 3
        %s289 = scalar_select %p288, %s19, 3
        %s290 = smul.addr %s289, 8
        %s291 = scalar_lea.vmem %s7, %s290
        %v293 = vld [vmem:[%s287] sm:$0xff]
        %v294 = vld [vmem:[%s287 + $0x8] sm:$0xff]
        %v295 = vld [vmem:[%s287 + $0x10] sm:$0xff]
        %v296 = vld [vmem:[%s287 + $0x18] sm:$0xf]
        %v297 = vld [vmem:[#allocation2] sm:$0xff]
        %v298 = vld [vmem:[#allocation2 + $0x8] sm:$0xff]
        %v299 = vld [vmem:[#allocation2 + $0x10] sm:$0xf]
        %v300 = vld [vmem:[#allocation2 + $0x14] sm:$0xff]
        %v301 = vld [vmem:[#allocation2 + $0x1c] sm:$0xff]
        %v302 = vld [vmem:[#allocation2 + $0x24] sm:$0xf]
        %v303 = vld [vmem:[#allocation2 + $0x28] sm:$0xff]
        %v304 = vld [vmem:[#allocation2 + $0x30] sm:$0xff]
        %v305 = vld [vmem:[#allocation2 + $0x38] sm:$0xf]
        %v306 = vld [vmem:[#allocation2 + $0x3c] sm:$0xff]
        %v307 = vld [vmem:[#allocation2 + $0x44] sm:$0xff]
        %v308 = vld [vmem:[#allocation2 + $0x4c] sm:$0xf]
        %v309 = vld [vmem:[#allocation2 + $0x50] sm:$0xff]
        %v310 = vld [vmem:[#allocation2 + $0x58] sm:$0xff]
        %v311 = vld [vmem:[#allocation2 + $0x60] sm:$0xf]
        %v312 = vld [vmem:[#allocation2 + $0x64] sm:$0xff]
        %v313 = vld [vmem:[#allocation2 + $0x6c] sm:$0xff]
        %v314 = vld [vmem:[#allocation2 + $0x74] sm:$0xf]
        %v315 = vld [vmem:[#allocation2 + $0x78] sm:$0xff]
        %v316 = vld [vmem:[#allocation2 + $0x80] sm:$0xff]
        %v317 = vld [vmem:[#allocation2 + $0x88] sm:$0xf]
        %v318 = vld [vmem:[#allocation2 + $0x8c] sm:$0xff]
        %v319 = vld [vmem:[#allocation2 + $0x94] sm:$0xff]
        %v320 = vld [vmem:[#allocation2 + $0x9c] sm:$0xf]
        %v321 = vld [vmem:[#allocation2 + $0xa0] sm:$0xff]
        %v322 = vld [vmem:[#allocation2 + $0xa8] sm:$0xff]
        %v323 = vld [vmem:[#allocation2 + $0xb0] sm:$0xf]
        %v324 = vld [vmem:[#allocation2 + $0xb4] sm:$0xff]
        %v325 = vld [vmem:[#allocation2 + $0xbc] sm:$0xff]
        %v326 = vld [vmem:[#allocation2 + $0xc4] sm:$0xf]
        %v327 = vld [vmem:[#allocation2 + $0xc8] sm:$0xff]
        %v328 = vld [vmem:[#allocation2 + $0xd0] sm:$0xff]
        %v329 = vld [vmem:[#allocation2 + $0xd8] sm:$0xf]
        %v330 = vld [vmem:[#allocation2 + $0xdc] sm:$0xff]
        %v331 = vld [vmem:[#allocation2 + $0xe4] sm:$0xff]
        %v332 = vld [vmem:[#allocation2 + $0xec] sm:$0xf]
        %v333 = vld [vmem:[#allocation2 + $0xf0] sm:$0xff]
        %v334 = vld [vmem:[#allocation2 + $0xf8] sm:$0xff]
        %v335 = vld [vmem:[#allocation2 + $0x100] sm:$0xf]
        %v336 = vld [vmem:[#allocation2 + $0x104] sm:$0xff]
        %v337 = vld [vmem:[#allocation2 + $0x10c] sm:$0xff]
        %v338 = vld [vmem:[#allocation2 + $0x114] sm:$0xf]
        %v339 = vld [vmem:[#allocation2 + $0x118] sm:$0xff]
        %v340 = vld [vmem:[#allocation2 + $0x120] sm:$0xff]
        %v341 = vld [vmem:[#allocation2 + $0x128] sm:$0xf]
        %v342 = vld [vmem:[#allocation2 + $0x12c] sm:$0xff]
        %v343 = vld [vmem:[#allocation2 + $0x134] sm:$0xff]
        %v344 = vld [vmem:[#allocation2 + $0x13c] sm:$0xf]
        %v345 = vld [vmem:[#allocation2 + $0x140] sm:$0xff]
        %v346 = vld [vmem:[#allocation2 + $0x148] sm:$0xff]
        %v347 = vld [vmem:[#allocation2 + $0x150] sm:$0xf]
        %v348 = vld [vmem:[#allocation2 + $0x154] sm:$0xff]
        %v349 = vld [vmem:[#allocation2 + $0x15c] sm:$0xff]
        %v350 = vld [vmem:[#allocation2 + $0x164] sm:$0xf]
        %v351 = vld [vmem:[#allocation2 + $0x168] sm:$0xff]
        %v352 = vld [vmem:[#allocation2 + $0x170] sm:$0xff]
        %v353 = vld [vmem:[#allocation2 + $0x178] sm:$0xf]
        %v354 = vld [vmem:[#allocation2 + $0x17c] sm:$0xff]
        %v355 = vld [vmem:[#allocation2 + $0x184] sm:$0xff]
        %v356 = vld [vmem:[#allocation2 + $0x18c] sm:$0xf]
        %v357 = vld [vmem:[#allocation2 + $0x190] sm:$0xff]
        %v358 = vld [vmem:[#allocation2 + $0x198] sm:$0xff]
        %v359 = vld [vmem:[#allocation2 + $0x1a0] sm:$0xf]
        %v360 = vld [vmem:[#allocation2 + $0x1a4] sm:$0xff]
        %v361 = vld [vmem:[#allocation2 + $0x1ac] sm:$0xff]
        %v362 = vld [vmem:[#allocation2 + $0x1b4] sm:$0xf]
        %v363 = vld [vmem:[#allocation2 + $0x1b8] sm:$0xff]
        %v364 = vld [vmem:[#allocation2 + $0x1c0] sm:$0xff]
        %v365 = vld [vmem:[#allocation2 + $0x1c8] sm:$0xf]
        %v366 = vld [vmem:[#allocation2 + $0x1cc] sm:$0xff]
        %v367 = vld [vmem:[#allocation2 + $0x1d4] sm:$0xff]
        %v368 = vld [vmem:[#allocation2 + $0x1dc] sm:$0xf]
        %v369 = vld [vmem:[#allocation2 + $0x1e0] sm:$0xff]
        %v370 = vld [vmem:[#allocation2 + $0x1e8] sm:$0xff]
        %v371 = vld [vmem:[#allocation2 + $0x1f0] sm:$0xf]
        %v372 = vld [vmem:[#allocation2 + $0x1f4] sm:$0xff]
        %v373 = vld [vmem:[#allocation2 + $0x1fc] sm:$0xff]
        %v374 = vld [vmem:[#allocation2 + $0x204] sm:$0xf]
        %v375 = vld [vmem:[#allocation2 + $0x208] sm:$0xff]
        %v376 = vld [vmem:[#allocation2 + $0x210] sm:$0xff]
        %v377 = vld [vmem:[#allocation2 + $0x218] sm:$0xf]
        %v378 = vld [vmem:[#allocation2 + $0x21c] sm:$0xff]
        %v379 = vld [vmem:[#allocation2 + $0x224] sm:$0xff]
        %v380 = vld [vmem:[#allocation2 + $0x22c] sm:$0xf]
        %v381 = vld [vmem:[#allocation2 + $0x230] sm:$0xff]
        %v382 = vld [vmem:[#allocation2 + $0x238] sm:$0xff]
        %v383 = vld [vmem:[#allocation2 + $0x240] sm:$0xf]
        %v384 = vld [vmem:[#allocation2 + $0x244] sm:$0xff]
        %v385 = vld [vmem:[#allocation2 + $0x24c] sm:$0xff]
        %v386 = vld [vmem:[#allocation2 + $0x254] sm:$0xf]
        %v387 = vld [vmem:[#allocation2 + $0x258] sm:$0xff]
        %v388 = vld [vmem:[#allocation2 + $0x260] sm:$0xff]
        %v389 = vld [vmem:[#allocation2 + $0x268] sm:$0xf]
        %v390 = vld [vmem:[#allocation2 + $0x26c] sm:$0xff]
        %v391 = vld [vmem:[#allocation2 + $0x274] sm:$0xff]
        %v392 = vld [vmem:[#allocation2 + $0x27c] sm:$0xf]
        %v393 = vld [vmem:[#allocation2 + $0x280] sm:$0xff]
        %v394 = vld [vmem:[#allocation2 + $0x288] sm:$0xff]
        %v395 = vld [vmem:[#allocation2 + $0x290] sm:$0xf]
        %v396 = vld [vmem:[#allocation2 + $0x294] sm:$0xff]
        %v397 = vld [vmem:[#allocation2 + $0x29c] sm:$0xff]
        %v398 = vld [vmem:[#allocation2 + $0x2a4] sm:$0xf]
        %v399 = vld [vmem:[#allocation2 + $0x2a8] sm:$0xff]
        %v400 = vld [vmem:[#allocation2 + $0x2b0] sm:$0xff]
        %v401 = vld [vmem:[#allocation2 + $0x2b8] sm:$0xf]
        %v402 = vld [vmem:[#allocation2 + $0x2bc] sm:$0xff]
        %v403 = vld [vmem:[#allocation2 + $0x2c4] sm:$0xff]
        %v404 = vld [vmem:[#allocation2 + $0x2cc] sm:$0xf]
        %v405 = vld [vmem:[#allocation2 + $0x2d0] sm:$0xff]
        %v406 = vld [vmem:[#allocation2 + $0x2d8] sm:$0xff]
        %v407 = vld [vmem:[#allocation2 + $0x2e0] sm:$0xf]
        %v408 = vld [vmem:[#allocation2 + $0x2e4] sm:$0xff]
        %v409 = vld [vmem:[#allocation2 + $0x2ec] sm:$0xff]
        %v410 = vld [vmem:[#allocation2 + $0x2f4] sm:$0xf]
        %v411 = vld [vmem:[#allocation2 + $0x2f8] sm:$0xff]
        %v412 = vld [vmem:[#allocation2 + $0x300] sm:$0xff]
        %v413 = vld [vmem:[#allocation2 + $0x308] sm:$0xf]
        %v414 = vld [vmem:[#allocation2 + $0x30c] sm:$0xff]
        %v415 = vld [vmem:[#allocation2 + $0x314] sm:$0xff]
        %v416 = vld [vmem:[#allocation2 + $0x31c] sm:$0xf]
        %v417 = vld [vmem:[#allocation2 + $0x320] sm:$0xff]
        %v418 = vld [vmem:[#allocation2 + $0x328] sm:$0xff]
        %v419 = vld [vmem:[#allocation2 + $0x330] sm:$0xf]
        %v420 = vld [vmem:[#allocation2 + $0x334] sm:$0xff]
        %v421 = vld [vmem:[#allocation2 + $0x33c] sm:$0xff]
        %v422 = vld [vmem:[#allocation2 + $0x344] sm:$0xf]
        %v423 = vld [vmem:[#allocation2 + $0x348] sm:$0xff]
        %v424 = vld [vmem:[#allocation2 + $0x350] sm:$0xff]
        %v425 = vld [vmem:[#allocation2 + $0x358] sm:$0xf]
        %v426 = vld [vmem:[#allocation2 + $0x35c] sm:$0xff]
        %v427 = vld [vmem:[#allocation2 + $0x364] sm:$0xff]
        %v428 = vld [vmem:[#allocation2 + $0x36c] sm:$0xf]
        %v429 = vld [vmem:[#allocation2 + $0x370] sm:$0xff]
        %v430 = vld [vmem:[#allocation2 + $0x378] sm:$0xff]
        %v431 = vld [vmem:[#allocation2 + $0x380] sm:$0xf]
        %v432 = vld [vmem:[#allocation2 + $0x384] sm:$0xff]
        %v433 = vld [vmem:[#allocation2 + $0x38c] sm:$0xff]
        %v434 = vld [vmem:[#allocation2 + $0x394] sm:$0xf]
        %v435 = vld [vmem:[#allocation2 + $0x398] sm:$0xff]
        %v436 = vld [vmem:[#allocation2 + $0x3a0] sm:$0xff]
        %v437 = vld [vmem:[#allocation2 + $0x3a8] sm:$0xf]
        %v438 = vld [vmem:[#allocation2 + $0x3ac] sm:$0xff]
        %v439 = vld [vmem:[#allocation2 + $0x3b4] sm:$0xff]
        %v440 = vld [vmem:[#allocation2 + $0x3bc] sm:$0xf]
        %v441 = vld [vmem:[#allocation2 + $0x3c0] sm:$0xff]
        %v442 = vld [vmem:[#allocation2 + $0x3c8] sm:$0xff]
        %v443 = vld [vmem:[#allocation2 + $0x3d0] sm:$0xf]
        %v444 = vld [vmem:[#allocation2 + $0x3d4] sm:$0xff]
        %v445 = vld [vmem:[#allocation2 + $0x3dc] sm:$0xff]
        %v446 = vld [vmem:[#allocation2 + $0x3e4] sm:$0xf]
        %v447 = vld [vmem:[#allocation2 + $0x3e8] sm:$0xff]
        %v448 = vld [vmem:[#allocation2 + $0x3f0] sm:$0xff]
        %v449 = vld [vmem:[#allocation2 + $0x3f8] sm:$0xf]
        %v450 = vld [vmem:[#allocation2 + $0x3fc] sm:$0xff]
        %v451 = vld [vmem:[#allocation2 + $0x404] sm:$0xff]
        %v452 = vld [vmem:[#allocation2 + $0x40c] sm:$0xf]
        %v453 = vld [vmem:[#allocation2 + $0x410] sm:$0xff]
        %v454 = vld [vmem:[#allocation2 + $0x418] sm:$0xff]
        %v455 = vld [vmem:[#allocation2 + $0x420] sm:$0xf]
        %v456 = vld [vmem:[#allocation2 + $0x424] sm:$0xff]
        %v457 = vld [vmem:[#allocation2 + $0x42c] sm:$0xff]
        %v458 = vld [vmem:[#allocation2 + $0x434] sm:$0xf]
        %v459 = vld [vmem:[#allocation2 + $0x438] sm:$0xff]
        %v460 = vld [vmem:[#allocation2 + $0x440] sm:$0xff]
        %v461 = vld [vmem:[#allocation2 + $0x448] sm:$0xf]
        %v462 = vld [vmem:[#allocation2 + $0x44c] sm:$0xff]
        %v463 = vld [vmem:[#allocation2 + $0x454] sm:$0xff]
        %v464 = vld [vmem:[#allocation2 + $0x45c] sm:$0xf]
        %v465 = vld [vmem:[#allocation2 + $0x460] sm:$0xff]
        %v466 = vld [vmem:[#allocation2 + $0x468] sm:$0xff]
        %v467 = vld [vmem:[#allocation2 + $0x470] sm:$0xf]
        %v468 = vld [vmem:[#allocation2 + $0x474] sm:$0xff]
        %v469 = vld [vmem:[#allocation2 + $0x47c] sm:$0xff]
        %v470 = vld [vmem:[#allocation2 + $0x484] sm:$0xf]
        %v471 = vld [vmem:[#allocation2 + $0x488] sm:$0xff]
        %v472 = vld [vmem:[#allocation2 + $0x490] sm:$0xff]
        %v473 = vld [vmem:[#allocation2 + $0x498] sm:$0xf]
        %v474 = vld [vmem:[#allocation2 + $0x49c] sm:$0xff]
        %v475 = vld [vmem:[#allocation2 + $0x4a4] sm:$0xff]
        %v476 = vld [vmem:[#allocation2 + $0x4ac] sm:$0xf]
        %v477 = vld [vmem:[#allocation2 + $0x4b0] sm:$0xff]
        %v478 = vld [vmem:[#allocation2 + $0x4b8] sm:$0xff]
        %v479 = vld [vmem:[#allocation2 + $0x4c0] sm:$0xf]
        %v480 = vld [vmem:[#allocation2 + $0x4c4] sm:$0xff]
        %v481 = vld [vmem:[#allocation2 + $0x4cc] sm:$0xff]
        %v482 = vld [vmem:[#allocation2 + $0x4d4] sm:$0xf]
        %v483 = vld [vmem:[#allocation2 + $0x4d8] sm:$0xff]
        %v484 = vld [vmem:[#allocation2 + $0x4e0] sm:$0xff]
        %v485 = vld [vmem:[#allocation2 + $0x4e8] sm:$0xf]
        %v486 = vld [vmem:[#allocation2 + $0x4ec] sm:$0xff]
        %v487 = vld [vmem:[#allocation2 + $0x4f4] sm:$0xff]
        %v488 = vld [vmem:[#allocation2 + $0x4fc] sm:$0xf]
        %v489 = vld [vmem:[#allocation2 + $0x500] sm:$0xff]
        %v490 = vld [vmem:[#allocation2 + $0x508] sm:$0xff]
        %v491 = vld [vmem:[#allocation2 + $0x510] sm:$0xf]
        %v492 = vld [vmem:[#allocation2 + $0x514] sm:$0xff]
        %v493 = vld [vmem:[#allocation2 + $0x51c] sm:$0xff]
        %v494 = vld [vmem:[#allocation2 + $0x524] sm:$0xf]
        %v495 = vld [vmem:[#allocation2 + $0x528] sm:$0xff]
        %v496 = vld [vmem:[#allocation2 + $0x530] sm:$0xff]
        %v497 = vld [vmem:[#allocation2 + $0x538] sm:$0xf]
        %v498 = vld [vmem:[#allocation2 + $0x53c] sm:$0xff]
        %v499 = vld [vmem:[#allocation2 + $0x544] sm:$0xff]
        %v500 = vld [vmem:[#allocation2 + $0x54c] sm:$0xf]
        %v501 = vld [vmem:[#allocation2 + $0x550] sm:$0xff]
        %v502 = vld [vmem:[#allocation2 + $0x558] sm:$0xff]
        %v503 = vld [vmem:[#allocation2 + $0x560] sm:$0xf]
        %v504 = vld [vmem:[#allocation2 + $0x564] sm:$0xff]
        %v505 = vld [vmem:[#allocation2 + $0x56c] sm:$0xff]
        %v506 = vld [vmem:[#allocation2 + $0x574] sm:$0xf]
        %v507 = vld [vmem:[#allocation2 + $0x578] sm:$0xff]
        %v508 = vld [vmem:[#allocation2 + $0x580] sm:$0xff]
        %v509 = vld [vmem:[#allocation2 + $0x588] sm:$0xf]
        %v510 = vld [vmem:[#allocation2 + $0x58c] sm:$0xff]
        %v511 = vld [vmem:[#allocation2 + $0x594] sm:$0xff]
        %v512 = vld [vmem:[#allocation2 + $0x59c] sm:$0xf]
        %v513 = vld [vmem:[#allocation2 + $0x5a0] sm:$0xff]
        %v514 = vld [vmem:[#allocation2 + $0x5a8] sm:$0xff]
        %v515 = vld [vmem:[#allocation2 + $0x5b0] sm:$0xf]
        %v516 = vld [vmem:[#allocation2 + $0x5b4] sm:$0xff]
        %v517 = vld [vmem:[#allocation2 + $0x5bc] sm:$0xff]
        %v518 = vld [vmem:[#allocation2 + $0x5c4] sm:$0xf]
        %v519 = vld [vmem:[#allocation2 + $0x5c8] sm:$0xff]
        %v520 = vld [vmem:[#allocation2 + $0x5d0] sm:$0xff]
        %v521 = vld [vmem:[#allocation2 + $0x5d8] sm:$0xf]
        %v522 = vld [vmem:[#allocation2 + $0x5dc] sm:$0xff]
        %v523 = vld [vmem:[#allocation2 + $0x5e4] sm:$0xff]
        %v524 = vld [vmem:[#allocation2 + $0x5ec] sm:$0xf]
        %v525 = vld [vmem:[#allocation2 + $0x5f0] sm:$0xff]
        %v526 = vld [vmem:[#allocation2 + $0x5f8] sm:$0xff]
        %v527 = vld [vmem:[#allocation2 + $0x600] sm:$0xf]
        %v528 = vld [vmem:[#allocation2 + $0x604] sm:$0xff]
        %v529 = vld [vmem:[#allocation2 + $0x60c] sm:$0xff]
        %v530 = vld [vmem:[#allocation2 + $0x614] sm:$0xf]
        %v531 = vld [vmem:[#allocation2 + $0x618] sm:$0xff]
        %v532 = vld [vmem:[#allocation2 + $0x620] sm:$0xff]
        %v533 = vld [vmem:[#allocation2 + $0x628] sm:$0xf]
        %v534 = vld [vmem:[#allocation2 + $0x62c] sm:$0xff]
        %v535 = vld [vmem:[#allocation2 + $0x634] sm:$0xff]
        %v536 = vld [vmem:[#allocation2 + $0x63c] sm:$0xf]
        %v537 = vld [vmem:[#allocation2 + $0x640] sm:$0xff]
        %v538 = vld [vmem:[#allocation2 + $0x648] sm:$0xff]
        %v539 = vld [vmem:[#allocation2 + $0x650] sm:$0xf]
        %v540 = vld [vmem:[#allocation2 + $0x654] sm:$0xff]
        %v541 = vld [vmem:[#allocation2 + $0x65c] sm:$0xff]
        %v542 = vld [vmem:[#allocation2 + $0x664] sm:$0xf]
        %v543 = vld [vmem:[#allocation2 + $0x668] sm:$0xff]
        %v544 = vld [vmem:[#allocation2 + $0x670] sm:$0xff]
        %v545 = vld [vmem:[#allocation2 + $0x678] sm:$0xf]
        %v546 = vld [vmem:[#allocation2 + $0x67c] sm:$0xff]
        %v547 = vld [vmem:[#allocation2 + $0x684] sm:$0xff]
        %v548 = vld [vmem:[#allocation2 + $0x68c] sm:$0xf]
        %v549 = vld [vmem:[#allocation2 + $0x690] sm:$0xff]
        %v550 = vld [vmem:[#allocation2 + $0x698] sm:$0xff]
        %v551 = vld [vmem:[#allocation2 + $0x6a0] sm:$0xf]
        %v552 = vld [vmem:[#allocation2 + $0x6a4] sm:$0xff]
        %v553 = vld [vmem:[#allocation2 + $0x6ac] sm:$0xff]
        %v554 = vld [vmem:[#allocation2 + $0x6b4] sm:$0xf]
        %v555 = vld [vmem:[#allocation2 + $0x6b8] sm:$0xff]
        %v556 = vld [vmem:[#allocation2 + $0x6c0] sm:$0xff]
        %v557 = vld [vmem:[#allocation2 + $0x6c8] sm:$0xf]
        %v558 = vld [vmem:[#allocation2 + $0x6cc] sm:$0xff]
        %v559 = vld [vmem:[#allocation2 + $0x6d4] sm:$0xff]
        %v560 = vld [vmem:[#allocation2 + $0x6dc] sm:$0xf]
        %v561 = vld [vmem:[#allocation2 + $0x6e0] sm:$0xff]
        %v562 = vld [vmem:[#allocation2 + $0x6e8] sm:$0xff]
        %v563 = vld [vmem:[#allocation2 + $0x6f0] sm:$0xf]
        %v564 = vld [vmem:[#allocation2 + $0x6f4] sm:$0xff]
        %v565 = vld [vmem:[#allocation2 + $0x6fc] sm:$0xff]
        %v566 = vld [vmem:[#allocation2 + $0x704] sm:$0xf]
        %v567 = vld [vmem:[#allocation2 + $0x708] sm:$0xff]
        %v568 = vld [vmem:[#allocation2 + $0x710] sm:$0xff]
        %v569 = vld [vmem:[#allocation2 + $0x718] sm:$0xf]
        %v570 = vld [vmem:[#allocation2 + $0x71c] sm:$0xff]
        %v571 = vld [vmem:[#allocation2 + $0x724] sm:$0xff]
        %v572 = vld [vmem:[#allocation2 + $0x72c] sm:$0xf]
        %v573 = vld [vmem:[#allocation2 + $0x730] sm:$0xff]
        %v574 = vld [vmem:[#allocation2 + $0x738] sm:$0xff]
        %v575 = vld [vmem:[#allocation2 + $0x740] sm:$0xf]
        %v576 = vld [vmem:[#allocation2 + $0x744] sm:$0xff]
        %v577 = vld [vmem:[#allocation2 + $0x74c] sm:$0xff]
        %v578 = vld [vmem:[#allocation2 + $0x754] sm:$0xf]
        %v579 = vld [vmem:[#allocation2 + $0x758] sm:$0xff]
        %v580 = vld [vmem:[#allocation2 + $0x760] sm:$0xff]
        %v581 = vld [vmem:[#allocation2 + $0x768] sm:$0xf]
        %v582 = vld [vmem:[#allocation2 + $0x76c] sm:$0xff]
        %v583 = vld [vmem:[#allocation2 + $0x774] sm:$0xff]
        %v584 = vld [vmem:[#allocation2 + $0x77c] sm:$0xf]
        %v585 = vld [vmem:[#allocation2 + $0x780] sm:$0xff]
        %v586 = vld [vmem:[#allocation2 + $0x788] sm:$0xff]
        %v587 = vld [vmem:[#allocation2 + $0x790] sm:$0xf]
        %v588 = vld [vmem:[#allocation2 + $0x794] sm:$0xff]
        %v589 = vld [vmem:[#allocation2 + $0x79c] sm:$0xff]
        %v590 = vld [vmem:[#allocation2 + $0x7a4] sm:$0xf]
        %v591 = vld [vmem:[%s2] sm:$0x1f]
        %v593 = vlaneseq
        %v594 = vshrl.u32 %v593, 7
        %v595 = vsub.s32 0, %v594
        %v596 = vrot.slane %v591, %v595
        %v597 = vlaneseq
        %v598 = vshrl.u32 %v597, 7
        %v599 = vsub.s32 1, %v598
        %v600 = vrot.slane %v591, %v599
        %v601 = vlaneseq
        %v602 = vshrl.u32 %v601, 7
        %v603 = vsub.s32 2, %v602
        %v604 = vrot.slane %v591, %v603
        %v605 = vlaneseq
        %v606 = vshrl.u32 %v605, 7
        %v607 = vsub.s32 3, %v606
        %v608 = vrot.slane %v591, %v607
        %v609 = vlaneseq
        %v610 = vshrl.u32 %v609, 7
        %v611 = vsub.s32 4, %v610
        %v612 = vrot.slane %v591, %v611
        %v622 = vunpack.c.l.b16 %v293
        %v623 = vunpack.c.h.b16 %v293
        %v624 = vunpack.c.l.b16 %v294
        %v625 = vunpack.c.h.b16 %v294
        %v626 = vunpack.c.l.b16 %v295
        %v627 = vunpack.c.h.b16 %v295
        %v628 = vunpack.c.l.b16 %v296
        %v629 = vpack.c.b16 %v622, %v622
        %v630 = vpack.c.b16 %v623, %v623
        %v631 = vpack.c.b16 %v624, %v624
        %v632 = vpack.c.b16 %v625, %v625
        %v633 = vpack.c.b16 %v626, %v626
        %v634 = vpack.c.b16 %v627, %v627
        %v635 = vpack.c.b16 %v628, %v628
        %v936 = vunpack.c.l.b16 %v297
        %v937 = vunpack.c.h.b16 %v297
        %v938 = vunpack.c.l.b16 %v298
        %v939 = vunpack.c.h.b16 %v298
        %v940 = vunpack.c.l.b16 %v299
        %v941 = vunpack.c.l.b16 %v300
        %v942 = vunpack.c.h.b16 %v300
        %v943 = vunpack.c.l.b16 %v301
        %v944 = vunpack.c.h.b16 %v301
        %v945 = vunpack.c.l.b16 %v302
        %v946 = vunpack.c.l.b16 %v303
        %v947 = vunpack.c.h.b16 %v303
        %v948 = vunpack.c.l.b16 %v304
        %v949 = vunpack.c.h.b16 %v304
        %v950 = vunpack.c.l.b16 %v305
        %v951 = vunpack.c.l.b16 %v306
        %v952 = vunpack.c.h.b16 %v306
        %v953 = vunpack.c.l.b16 %v307
        %v954 = vunpack.c.h.b16 %v307
        %v955 = vunpack.c.l.b16 %v308
        %v956 = vunpack.c.l.b16 %v309
        %v957 = vunpack.c.h.b16 %v309
        %v958 = vunpack.c.l.b16 %v310
        %v959 = vunpack.c.h.b16 %v310
        %v960 = vunpack.c.l.b16 %v311
        %v961 = vunpack.c.l.b16 %v312
        %v962 = vunpack.c.h.b16 %v312
        %v963 = vunpack.c.l.b16 %v313
        %v964 = vunpack.c.h.b16 %v313
        %v965 = vunpack.c.l.b16 %v314
        %v966 = vunpack.c.l.b16 %v315
        %v967 = vunpack.c.h.b16 %v315
        %v968 = vunpack.c.l.b16 %v316
        %v969 = vunpack.c.h.b16 %v316
        %v970 = vunpack.c.l.b16 %v317
        %v971 = vunpack.c.l.b16 %v318
        %v972 = vunpack.c.h.b16 %v318
        %v973 = vunpack.c.l.b16 %v319
        %v974 = vunpack.c.h.b16 %v319
        %v975 = vunpack.c.l.b16 %v320
        %v976 = vunpack.c.l.b16 %v321
        %v977 = vunpack.c.h.b16 %v321
        %v978 = vunpack.c.l.b16 %v322
        %v979 = vunpack.c.h.b16 %v322
        %v980 = vunpack.c.l.b16 %v323
        %v981 = vunpack.c.l.b16 %v324
        %v982 = vunpack.c.h.b16 %v324
        %v983 = vunpack.c.l.b16 %v325
        %v984 = vunpack.c.h.b16 %v325
        %v985 = vunpack.c.l.b16 %v326
        %v986 = vunpack.c.l.b16 %v327
        %v987 = vunpack.c.h.b16 %v327
        %v988 = vunpack.c.l.b16 %v328
        %v989 = vunpack.c.h.b16 %v328
        %v990 = vunpack.c.l.b16 %v329
        %v991 = vunpack.c.l.b16 %v330
        %v992 = vunpack.c.h.b16 %v330
        %v993 = vunpack.c.l.b16 %v331
        %v994 = vunpack.c.h.b16 %v331
        %v995 = vunpack.c.l.b16 %v332
        %v996 = vunpack.c.l.b16 %v333
        %v997 = vunpack.c.h.b16 %v333
        %v998 = vunpack.c.l.b16 %v334
        %v999 = vunpack.c.h.b16 %v334
        %v1000 = vunpack.c.l.b16 %v335
        %v1001 = vunpack.c.l.b16 %v336
        %v1002 = vunpack.c.h.b16 %v336
        %v1003 = vunpack.c.l.b16 %v337
        %v1004 = vunpack.c.h.b16 %v337
        %v1005 = vunpack.c.l.b16 %v338
        %v1006 = vunpack.c.l.b16 %v339
        %v1007 = vunpack.c.h.b16 %v339
        %v1008 = vunpack.c.l.b16 %v340
        %v1009 = vunpack.c.h.b16 %v340
        %v1010 = vunpack.c.l.b16 %v341
        %v1011 = vunpack.c.l.b16 %v342
        %v1012 = vunpack.c.h.b16 %v342
        %v1013 = vunpack.c.l.b16 %v343
        %v1014 = vunpack.c.h.b16 %v343
        %v1015 = vunpack.c.l.b16 %v344
        %v1016 = vunpack.c.l.b16 %v345
        %v1017 = vunpack.c.h.b16 %v345
        %v1018 = vunpack.c.l.b16 %v346
        %v1019 = vunpack.c.h.b16 %v346
        %v1020 = vunpack.c.l.b16 %v347
        %v1021 = vunpack.c.l.b16 %v348
        %v1022 = vunpack.c.h.b16 %v348
        %v1023 = vunpack.c.l.b16 %v349
        %v1024 = vunpack.c.h.b16 %v349
        %v1025 = vunpack.c.l.b16 %v350
        %v1026 = vunpack.c.l.b16 %v351
        %v1027 = vunpack.c.h.b16 %v351
        %v1028 = vunpack.c.l.b16 %v352
        %v1029 = vunpack.c.h.b16 %v352
        %v1030 = vunpack.c.l.b16 %v353
        %v1031 = vunpack.c.l.b16 %v354
        %v1032 = vunpack.c.h.b16 %v354
        %v1033 = vunpack.c.l.b16 %v355
        %v1034 = vunpack.c.h.b16 %v355
        %v1035 = vunpack.c.l.b16 %v356
        %v1036 = vunpack.c.l.b16 %v357
        %v1037 = vunpack.c.h.b16 %v357
        %v1038 = vunpack.c.l.b16 %v358
        %v1039 = vunpack.c.h.b16 %v358
        %v1040 = vunpack.c.l.b16 %v359
        %v1041 = vunpack.c.l.b16 %v360
        %v1042 = vunpack.c.h.b16 %v360
        %v1043 = vunpack.c.l.b16 %v361
        %v1044 = vunpack.c.h.b16 %v361
        %v1045 = vunpack.c.l.b16 %v362
        %v1046 = vunpack.c.l.b16 %v363
        %v1047 = vunpack.c.h.b16 %v363
        %v1048 = vunpack.c.l.b16 %v364
        %v1049 = vunpack.c.h.b16 %v364
        %v1050 = vunpack.c.l.b16 %v365
        %v1051 = vunpack.c.l.b16 %v366
        %v1052 = vunpack.c.h.b16 %v366
        %v1053 = vunpack.c.l.b16 %v367
        %v1054 = vunpack.c.h.b16 %v367
        %v1055 = vunpack.c.l.b16 %v368
        %v1056 = vunpack.c.l.b16 %v369
        %v1057 = vunpack.c.h.b16 %v369
        %v1058 = vunpack.c.l.b16 %v370
        %v1059 = vunpack.c.h.b16 %v370
        %v1060 = vunpack.c.l.b16 %v371
        %v1061 = vunpack.c.l.b16 %v372
        %v1062 = vunpack.c.h.b16 %v372
        %v1063 = vunpack.c.l.b16 %v373
        %v1064 = vunpack.c.h.b16 %v373
        %v1065 = vunpack.c.l.b16 %v374
        %v1066 = vunpack.c.l.b16 %v375
        %v1067 = vunpack.c.h.b16 %v375
        %v1068 = vunpack.c.l.b16 %v376
        %v1069 = vunpack.c.h.b16 %v376
        %v1070 = vunpack.c.l.b16 %v377
        %v1071 = vunpack.c.l.b16 %v378
        %v1072 = vunpack.c.h.b16 %v378
        %v1073 = vunpack.c.l.b16 %v379
        %v1074 = vunpack.c.h.b16 %v379
        %v1075 = vunpack.c.l.b16 %v380
        %v1076 = vunpack.c.l.b16 %v381
        %v1077 = vunpack.c.h.b16 %v381
        %v1078 = vunpack.c.l.b16 %v382
        %v1079 = vunpack.c.h.b16 %v382
        %v1080 = vunpack.c.l.b16 %v383
        %v1081 = vunpack.c.l.b16 %v384
        %v1082 = vunpack.c.h.b16 %v384
        %v1083 = vunpack.c.l.b16 %v385
        %v1084 = vunpack.c.h.b16 %v385
        %v1085 = vunpack.c.l.b16 %v386
        %v1086 = vunpack.c.l.b16 %v387
        %v1087 = vunpack.c.h.b16 %v387
        %v1088 = vunpack.c.l.b16 %v388
        %v1089 = vunpack.c.h.b16 %v388
        %v1090 = vunpack.c.l.b16 %v389
        %v1091 = vunpack.c.l.b16 %v390
        %v1092 = vunpack.c.h.b16 %v390
        %v1093 = vunpack.c.l.b16 %v391
        %v1094 = vunpack.c.h.b16 %v391
        %v1095 = vunpack.c.l.b16 %v392
        %v1096 = vunpack.c.l.b16 %v393
        %v1097 = vunpack.c.h.b16 %v393
        %v1098 = vunpack.c.l.b16 %v394
        %v1099 = vunpack.c.h.b16 %v394
        %v1100 = vunpack.c.l.b16 %v395
        %v1101 = vunpack.c.l.b16 %v396
        %v1102 = vunpack.c.h.b16 %v396
        %v1103 = vunpack.c.l.b16 %v397
        %v1104 = vunpack.c.h.b16 %v397
        %v1105 = vunpack.c.l.b16 %v398
        %v1106 = vunpack.c.l.b16 %v399
        %v1107 = vunpack.c.h.b16 %v399
        %v1108 = vunpack.c.l.b16 %v400
        %v1109 = vunpack.c.h.b16 %v400
        %v1110 = vunpack.c.l.b16 %v401
        %v1111 = vunpack.c.l.b16 %v402
        %v1112 = vunpack.c.h.b16 %v402
        %v1113 = vunpack.c.l.b16 %v403
        %v1114 = vunpack.c.h.b16 %v403
        %v1115 = vunpack.c.l.b16 %v404
        %v1116 = vunpack.c.l.b16 %v405
        %v1117 = vunpack.c.h.b16 %v405
        %v1118 = vunpack.c.l.b16 %v406
        %v1119 = vunpack.c.h.b16 %v406
        %v1120 = vunpack.c.l.b16 %v407
        %v1121 = vunpack.c.l.b16 %v408
        %v1122 = vunpack.c.h.b16 %v408
        %v1123 = vunpack.c.l.b16 %v409
        %v1124 = vunpack.c.h.b16 %v409
        %v1125 = vunpack.c.l.b16 %v410
        %v1126 = vunpack.c.l.b16 %v411
        %v1127 = vunpack.c.h.b16 %v411
        %v1128 = vunpack.c.l.b16 %v412
        %v1129 = vunpack.c.h.b16 %v412
        %v1130 = vunpack.c.l.b16 %v413
        %v1131 = vunpack.c.l.b16 %v414
        %v1132 = vunpack.c.h.b16 %v414
        %v1133 = vunpack.c.l.b16 %v415
        %v1134 = vunpack.c.h.b16 %v415
        %v1135 = vunpack.c.l.b16 %v416
        %v1136 = vunpack.c.l.b16 %v417
        %v1137 = vunpack.c.h.b16 %v417
        %v1138 = vunpack.c.l.b16 %v418
        %v1139 = vunpack.c.h.b16 %v418
        %v1140 = vunpack.c.l.b16 %v419
        %v1141 = vunpack.c.l.b16 %v420
        %v1142 = vunpack.c.h.b16 %v420
        %v1143 = vunpack.c.l.b16 %v421
        %v1144 = vunpack.c.h.b16 %v421
        %v1145 = vunpack.c.l.b16 %v422
        %v1146 = vunpack.c.l.b16 %v423
        %v1147 = vunpack.c.h.b16 %v423
        %v1148 = vunpack.c.l.b16 %v424
        %v1149 = vunpack.c.h.b16 %v424
        %v1150 = vunpack.c.l.b16 %v425
        %v1151 = vunpack.c.l.b16 %v426
        %v1152 = vunpack.c.h.b16 %v426
        %v1153 = vunpack.c.l.b16 %v427
        %v1154 = vunpack.c.h.b16 %v427
        %v1155 = vunpack.c.l.b16 %v428
        %v1156 = vunpack.c.l.b16 %v429
        %v1157 = vunpack.c.h.b16 %v429
        %v1158 = vunpack.c.l.b16 %v430
        %v1159 = vunpack.c.h.b16 %v430
        %v1160 = vunpack.c.l.b16 %v431
        %v1161 = vunpack.c.l.b16 %v432
        %v1162 = vunpack.c.h.b16 %v432
        %v1163 = vunpack.c.l.b16 %v433
        %v1164 = vunpack.c.h.b16 %v433
        %v1165 = vunpack.c.l.b16 %v434
        %v1166 = vunpack.c.l.b16 %v435
        %v1167 = vunpack.c.h.b16 %v435
        %v1168 = vunpack.c.l.b16 %v436
        %v1169 = vunpack.c.h.b16 %v436
        %v1170 = vunpack.c.l.b16 %v437
        %v1171 = vunpack.c.l.b16 %v438
        %v1172 = vunpack.c.h.b16 %v438
        %v1173 = vunpack.c.l.b16 %v439
        %v1174 = vunpack.c.h.b16 %v439
        %v1175 = vunpack.c.l.b16 %v440
        %v1176 = vunpack.c.l.b16 %v441
        %v1177 = vunpack.c.h.b16 %v441
        %v1178 = vunpack.c.l.b16 %v442
        %v1179 = vunpack.c.h.b16 %v442
        %v1180 = vunpack.c.l.b16 %v443
        %v1181 = vunpack.c.l.b16 %v444
        %v1182 = vunpack.c.h.b16 %v444
        %v1183 = vunpack.c.l.b16 %v445
        %v1184 = vunpack.c.h.b16 %v445
        %v1185 = vunpack.c.l.b16 %v446
        %v1186 = vunpack.c.l.b16 %v447
        %v1187 = vunpack.c.h.b16 %v447
        %v1188 = vunpack.c.l.b16 %v448
        %v1189 = vunpack.c.h.b16 %v448
        %v1190 = vunpack.c.l.b16 %v449
        %v1191 = vunpack.c.l.b16 %v450
        %v1192 = vunpack.c.h.b16 %v450
        %v1193 = vunpack.c.l.b16 %v451
        %v1194 = vunpack.c.h.b16 %v451
        %v1195 = vunpack.c.l.b16 %v452
        %v1196 = vunpack.c.l.b16 %v453
        %v1197 = vunpack.c.h.b16 %v453
        %v1198 = vunpack.c.l.b16 %v454
        %v1199 = vunpack.c.h.b16 %v454
        %v1200 = vunpack.c.l.b16 %v455
        %v1201 = vunpack.c.l.b16 %v456
        %v1202 = vunpack.c.h.b16 %v456
        %v1203 = vunpack.c.l.b16 %v457
        %v1204 = vunpack.c.h.b16 %v457
        %v1205 = vunpack.c.l.b16 %v458
        %v1206 = vunpack.c.l.b16 %v459
        %v1207 = vunpack.c.h.b16 %v459
        %v1208 = vunpack.c.l.b16 %v460
        %v1209 = vunpack.c.h.b16 %v460
        %v1210 = vunpack.c.l.b16 %v461
        %v1211 = vunpack.c.l.b16 %v462
        %v1212 = vunpack.c.h.b16 %v462
        %v1213 = vunpack.c.l.b16 %v463
        %v1214 = vunpack.c.h.b16 %v463
        %v1215 = vunpack.c.l.b16 %v464
        %v1216 = vunpack.c.l.b16 %v465
        %v1217 = vunpack.c.h.b16 %v465
        %v1218 = vunpack.c.l.b16 %v466
        %v1219 = vunpack.c.h.b16 %v466
        %v1220 = vunpack.c.l.b16 %v467
        %v1221 = vunpack.c.l.b16 %v468
        %v1222 = vunpack.c.h.b16 %v468
        %v1223 = vunpack.c.l.b16 %v469
        %v1224 = vunpack.c.h.b16 %v469
        %v1225 = vunpack.c.l.b16 %v470
        %v1226 = vunpack.c.l.b16 %v471
        %v1227 = vunpack.c.h.b16 %v471
        %v1228 = vunpack.c.l.b16 %v472
        %v1229 = vunpack.c.h.b16 %v472
        %v1230 = vunpack.c.l.b16 %v473
        %v1231 = vunpack.c.l.b16 %v474
        %v1232 = vunpack.c.h.b16 %v474
        %v1233 = vunpack.c.l.b16 %v475
        %v1234 = vunpack.c.h.b16 %v475
        %v1235 = vunpack.c.l.b16 %v476
        %v1236 = vunpack.c.l.b16 %v477
        %v1237 = vunpack.c.h.b16 %v477
        %v1238 = vunpack.c.l.b16 %v478
        %v1239 = vunpack.c.h.b16 %v478
        %v1240 = vunpack.c.l.b16 %v479
        %v1241 = vunpack.c.l.b16 %v480
        %v1242 = vunpack.c.h.b16 %v480
        %v1243 = vunpack.c.l.b16 %v481
        %v1244 = vunpack.c.h.b16 %v481
        %v1245 = vunpack.c.l.b16 %v482
        %v1246 = vunpack.c.l.b16 %v483
        %v1247 = vunpack.c.h.b16 %v483
        %v1248 = vunpack.c.l.b16 %v484
        %v1249 = vunpack.c.h.b16 %v484
        %v1250 = vunpack.c.l.b16 %v485
        %v1251 = vunpack.c.l.b16 %v486
        %v1252 = vunpack.c.h.b16 %v486
        %v1253 = vunpack.c.l.b16 %v487
        %v1254 = vunpack.c.h.b16 %v487
        %v1255 = vunpack.c.l.b16 %v488
        %v1256 = vunpack.c.l.b16 %v489
        %v1257 = vunpack.c.h.b16 %v489
        %v1258 = vunpack.c.l.b16 %v490
        %v1259 = vunpack.c.h.b16 %v490
        %v1260 = vunpack.c.l.b16 %v491
        %v1261 = vunpack.c.l.b16 %v492
        %v1262 = vunpack.c.h.b16 %v492
        %v1263 = vunpack.c.l.b16 %v493
        %v1264 = vunpack.c.h.b16 %v493
        %v1265 = vunpack.c.l.b16 %v494
        %v1266 = vunpack.c.l.b16 %v495
        %v1267 = vunpack.c.h.b16 %v495
        %v1268 = vunpack.c.l.b16 %v496
        %v1269 = vunpack.c.h.b16 %v496
        %v1270 = vunpack.c.l.b16 %v497
        %v1271 = vunpack.c.l.b16 %v498
        %v1272 = vunpack.c.h.b16 %v498
        %v1273 = vunpack.c.l.b16 %v499
        %v1274 = vunpack.c.h.b16 %v499
        %v1275 = vunpack.c.l.b16 %v500
        %v1276 = vunpack.c.l.b16 %v501
        %v1277 = vunpack.c.h.b16 %v501
        %v1278 = vunpack.c.l.b16 %v502
        %v1279 = vunpack.c.h.b16 %v502
        %v1280 = vunpack.c.l.b16 %v503
        %v1281 = vunpack.c.l.b16 %v504
        %v1282 = vunpack.c.h.b16 %v504
        %v1283 = vunpack.c.l.b16 %v505
        %v1284 = vunpack.c.h.b16 %v505
        %v1285 = vunpack.c.l.b16 %v506
        %v1286 = vunpack.c.l.b16 %v507
        %v1287 = vunpack.c.h.b16 %v507
        %v1288 = vunpack.c.l.b16 %v508
        %v1289 = vunpack.c.h.b16 %v508
        %v1290 = vunpack.c.l.b16 %v509
        %v1291 = vunpack.c.l.b16 %v510
        %v1292 = vunpack.c.h.b16 %v510
        %v1293 = vunpack.c.l.b16 %v511
        %v1294 = vunpack.c.h.b16 %v511
        %v1295 = vunpack.c.l.b16 %v512
        %v1296 = vunpack.c.l.b16 %v513
        %v1297 = vunpack.c.h.b16 %v513
        %v1298 = vunpack.c.l.b16 %v514
        %v1299 = vunpack.c.h.b16 %v514
        %v1300 = vunpack.c.l.b16 %v515
        %v1301 = vunpack.c.l.b16 %v516
        %v1302 = vunpack.c.h.b16 %v516
        %v1303 = vunpack.c.l.b16 %v517
        %v1304 = vunpack.c.h.b16 %v517
        %v1305 = vunpack.c.l.b16 %v518
        %v1306 = vunpack.c.l.b16 %v519
        %v1307 = vunpack.c.h.b16 %v519
        %v1308 = vunpack.c.l.b16 %v520
        %v1309 = vunpack.c.h.b16 %v520
        %v1310 = vunpack.c.l.b16 %v521
        %v1311 = vunpack.c.l.b16 %v522
        %v1312 = vunpack.c.h.b16 %v522
        %v1313 = vunpack.c.l.b16 %v523
        %v1314 = vunpack.c.h.b16 %v523
        %v1315 = vunpack.c.l.b16 %v524
        %v1316 = vunpack.c.l.b16 %v525
        %v1317 = vunpack.c.h.b16 %v525
        %v1318 = vunpack.c.l.b16 %v526
        %v1319 = vunpack.c.h.b16 %v526
        %v1320 = vunpack.c.l.b16 %v527
        %v1321 = vunpack.c.l.b16 %v528
        %v1322 = vunpack.c.h.b16 %v528
        %v1323 = vunpack.c.l.b16 %v529
        %v1324 = vunpack.c.h.b16 %v529
        %v1325 = vunpack.c.l.b16 %v530
        %v1326 = vunpack.c.l.b16 %v531
        %v1327 = vunpack.c.h.b16 %v531
        %v1328 = vunpack.c.l.b16 %v532
        %v1329 = vunpack.c.h.b16 %v532
        %v1330 = vunpack.c.l.b16 %v533
        %v1331 = vunpack.c.l.b16 %v534
        %v1332 = vunpack.c.h.b16 %v534
        %v1333 = vunpack.c.l.b16 %v535
        %v1334 = vunpack.c.h.b16 %v535
        %v1335 = vunpack.c.l.b16 %v536
        %v1336 = vunpack.c.l.b16 %v537
        %v1337 = vunpack.c.h.b16 %v537
        %v1338 = vunpack.c.l.b16 %v538
        %v1339 = vunpack.c.h.b16 %v538
        %v1340 = vunpack.c.l.b16 %v539
        %v1341 = vunpack.c.l.b16 %v540
        %v1342 = vunpack.c.h.b16 %v540
        %v1343 = vunpack.c.l.b16 %v541
        %v1344 = vunpack.c.h.b16 %v541
        %v1345 = vunpack.c.l.b16 %v542
        %v1346 = vunpack.c.l.b16 %v543
        %v1347 = vunpack.c.h.b16 %v543
        %v1348 = vunpack.c.l.b16 %v544
        %v1349 = vunpack.c.h.b16 %v544
        %v1350 = vunpack.c.l.b16 %v545
        %v1351 = vunpack.c.l.b16 %v546
        %v1352 = vunpack.c.h.b16 %v546
        %v1353 = vunpack.c.l.b16 %v547
        %v1354 = vunpack.c.h.b16 %v547
        %v1355 = vunpack.c.l.b16 %v548
        %v1356 = vunpack.c.l.b16 %v549
        %v1357 = vunpack.c.h.b16 %v549
        %v1358 = vunpack.c.l.b16 %v550
        %v1359 = vunpack.c.h.b16 %v550
        %v1360 = vunpack.c.l.b16 %v551
        %v1361 = vunpack.c.l.b16 %v552
        %v1362 = vunpack.c.h.b16 %v552
        %v1363 = vunpack.c.l.b16 %v553
        %v1364 = vunpack.c.h.b16 %v553
        %v1365 = vunpack.c.l.b16 %v554
        %v1366 = vunpack.c.l.b16 %v555
        %v1367 = vunpack.c.h.b16 %v555
        %v1368 = vunpack.c.l.b16 %v556
        %v1369 = vunpack.c.h.b16 %v556
        %v1370 = vunpack.c.l.b16 %v557
        %v1371 = vunpack.c.l.b16 %v558
        %v1372 = vunpack.c.h.b16 %v558
        %v1373 = vunpack.c.l.b16 %v559
        %v1374 = vunpack.c.h.b16 %v559
        %v1375 = vunpack.c.l.b16 %v560
        %v1376 = vunpack.c.l.b16 %v561
        %v1377 = vunpack.c.h.b16 %v561
        %v1378 = vunpack.c.l.b16 %v562
        %v1379 = vunpack.c.h.b16 %v562
        %v1380 = vunpack.c.l.b16 %v563
        %v1381 = vunpack.c.l.b16 %v564
        %v1382 = vunpack.c.h.b16 %v564
        %v1383 = vunpack.c.l.b16 %v565
        %v1384 = vunpack.c.h.b16 %v565
        %v1385 = vunpack.c.l.b16 %v566
        %v1386 = vunpack.c.l.b16 %v567
        %v1387 = vunpack.c.h.b16 %v567
        %v1388 = vunpack.c.l.b16 %v568
        %v1389 = vunpack.c.h.b16 %v568
        %v1390 = vunpack.c.l.b16 %v569
        %v1391 = vunpack.c.l.b16 %v570
        %v1392 = vunpack.c.h.b16 %v570
        %v1393 = vunpack.c.l.b16 %v571
        %v1394 = vunpack.c.h.b16 %v571
        %v1395 = vunpack.c.l.b16 %v572
        %v1396 = vunpack.c.l.b16 %v573
        %v1397 = vunpack.c.h.b16 %v573
        %v1398 = vunpack.c.l.b16 %v574
        %v1399 = vunpack.c.h.b16 %v574
        %v1400 = vunpack.c.l.b16 %v575
        %v1401 = vunpack.c.l.b16 %v576
        %v1402 = vunpack.c.h.b16 %v576
        %v1403 = vunpack.c.l.b16 %v577
        %v1404 = vunpack.c.h.b16 %v577
        %v1405 = vunpack.c.l.b16 %v578
        %v1406 = vunpack.c.l.b16 %v579
        %v1407 = vunpack.c.h.b16 %v579
        %v1408 = vunpack.c.l.b16 %v580
        %v1409 = vunpack.c.h.b16 %v580
        %v1410 = vunpack.c.l.b16 %v581
        %v1411 = vunpack.c.l.b16 %v582
        %v1412 = vunpack.c.h.b16 %v582
        %v1413 = vunpack.c.l.b16 %v583
        %v1414 = vunpack.c.h.b16 %v583
        %v1415 = vunpack.c.l.b16 %v584
        %v1416 = vunpack.c.l.b16 %v585
        %v1417 = vunpack.c.h.b16 %v585
        %v1418 = vunpack.c.l.b16 %v586
        %v1419 = vunpack.c.h.b16 %v586
        %v1420 = vunpack.c.l.b16 %v587
        %v1421 = vunpack.c.l.b16 %v588
        %v1422 = vunpack.c.h.b16 %v588
        %v1423 = vunpack.c.l.b16 %v589
        %v1424 = vunpack.c.h.b16 %v589
        %v1425 = vunpack.c.l.b16 %v590
        %v1426 = vpack.c.b16 %v941, %v936
        %v1427 = vpack.c.b16 %v942, %v937
        %v1428 = vpack.c.b16 %v943, %v938
        %v1429 = vpack.c.b16 %v944, %v939
        %v1430 = vpack.c.b16 %v945, %v940
        %v1431 = vpack.c.b16 %v951, %v946
        %v1432 = vpack.c.b16 %v952, %v947
        %v1433 = vpack.c.b16 %v953, %v948
        %v1434 = vpack.c.b16 %v954, %v949
        %v1435 = vpack.c.b16 %v955, %v950
        %v1436 = vpack.c.b16 %v961, %v956
        %v1437 = vpack.c.b16 %v962, %v957
        %v1438 = vpack.c.b16 %v963, %v958
        %v1439 = vpack.c.b16 %v964, %v959
        %v1440 = vpack.c.b16 %v965, %v960
        %v1441 = vpack.c.b16 %v971, %v966
        %v1442 = vpack.c.b16 %v972, %v967
        %v1443 = vpack.c.b16 %v973, %v968
        %v1444 = vpack.c.b16 %v974, %v969
        %v1445 = vpack.c.b16 %v975, %v970
        %v1446 = vpack.c.b16 %v981, %v976
        %v1447 = vpack.c.b16 %v982, %v977
        %v1448 = vpack.c.b16 %v983, %v978
        %v1449 = vpack.c.b16 %v984, %v979
        %v1450 = vpack.c.b16 %v985, %v980
        %v1451 = vpack.c.b16 %v991, %v986
        %v1452 = vpack.c.b16 %v992, %v987
        %v1453 = vpack.c.b16 %v993, %v988
        %v1454 = vpack.c.b16 %v994, %v989
        %v1455 = vpack.c.b16 %v995, %v990
        %v1456 = vpack.c.b16 %v1001, %v996
        %v1457 = vpack.c.b16 %v1002, %v997
        %v1458 = vpack.c.b16 %v1003, %v998
        %v1459 = vpack.c.b16 %v1004, %v999
        %v1460 = vpack.c.b16 %v1005, %v1000
        %v1461 = vpack.c.b16 %v1011, %v1006
        %v1462 = vpack.c.b16 %v1012, %v1007
        %v1463 = vpack.c.b16 %v1013, %v1008
        %v1464 = vpack.c.b16 %v1014, %v1009
        %v1465 = vpack.c.b16 %v1015, %v1010
        %v1466 = vpack.c.b16 %v1021, %v1016
        %v1467 = vpack.c.b16 %v1022, %v1017
        %v1468 = vpack.c.b16 %v1023, %v1018
        %v1469 = vpack.c.b16 %v1024, %v1019
        %v1470 = vpack.c.b16 %v1025, %v1020
        %v1471 = vpack.c.b16 %v1031, %v1026
        %v1472 = vpack.c.b16 %v1032, %v1027
        %v1473 = vpack.c.b16 %v1033, %v1028
        %v1474 = vpack.c.b16 %v1034, %v1029
        %v1475 = vpack.c.b16 %v1035, %v1030
        %v1476 = vpack.c.b16 %v1041, %v1036
        %v1477 = vpack.c.b16 %v1042, %v1037
        %v1478 = vpack.c.b16 %v1043, %v1038
        %v1479 = vpack.c.b16 %v1044, %v1039
        %v1480 = vpack.c.b16 %v1045, %v1040
        %v1481 = vpack.c.b16 %v1051, %v1046
        %v1482 = vpack.c.b16 %v1052, %v1047
        %v1483 = vpack.c.b16 %v1053, %v1048
        %v1484 = vpack.c.b16 %v1054, %v1049
        %v1485 = vpack.c.b16 %v1055, %v1050
        %v1486 = vpack.c.b16 %v1061, %v1056
        %v1487 = vpack.c.b16 %v1062, %v1057
        %v1488 = vpack.c.b16 %v1063, %v1058
        %v1489 = vpack.c.b16 %v1064, %v1059
        %v1490 = vpack.c.b16 %v1065, %v1060
        %v1491 = vpack.c.b16 %v1071, %v1066
        %v1492 = vpack.c.b16 %v1072, %v1067
        %v1493 = vpack.c.b16 %v1073, %v1068
        %v1494 = vpack.c.b16 %v1074, %v1069
        %v1495 = vpack.c.b16 %v1075, %v1070
        %v1496 = vpack.c.b16 %v1081, %v1076
        %v1497 = vpack.c.b16 %v1082, %v1077
        %v1498 = vpack.c.b16 %v1083, %v1078
        %v1499 = vpack.c.b16 %v1084, %v1079
        %v1500 = vpack.c.b16 %v1085, %v1080
        %v1501 = vpack.c.b16 %v1091, %v1086
        %v1502 = vpack.c.b16 %v1092, %v1087
        %v1503 = vpack.c.b16 %v1093, %v1088
        %v1504 = vpack.c.b16 %v1094, %v1089
        %v1505 = vpack.c.b16 %v1095, %v1090
        %v1506 = vpack.c.b16 %v1101, %v1096
        %v1507 = vpack.c.b16 %v1102, %v1097
        %v1508 = vpack.c.b16 %v1103, %v1098
        %v1509 = vpack.c.b16 %v1104, %v1099
        %v1510 = vpack.c.b16 %v1105, %v1100
        %v1511 = vpack.c.b16 %v1111, %v1106
        %v1512 = vpack.c.b16 %v1112, %v1107
        %v1513 = vpack.c.b16 %v1113, %v1108
        %v1514 = vpack.c.b16 %v1114, %v1109
        %v1515 = vpack.c.b16 %v1115, %v1110
        %v1516 = vpack.c.b16 %v1121, %v1116
        %v1517 = vpack.c.b16 %v1122, %v1117
        %v1518 = vpack.c.b16 %v1123, %v1118
        %v1519 = vpack.c.b16 %v1124, %v1119
        %v1520 = vpack.c.b16 %v1125, %v1120
        %v1521 = vpack.c.b16 %v1131, %v1126
        %v1522 = vpack.c.b16 %v1132, %v1127
        %v1523 = vpack.c.b16 %v1133, %v1128
        %v1524 = vpack.c.b16 %v1134, %v1129
        %v1525 = vpack.c.b16 %v1135, %v1130
        %v1526 = vpack.c.b16 %v1141, %v1136
        %v1527 = vpack.c.b16 %v1142, %v1137
        %v1528 = vpack.c.b16 %v1143, %v1138
        %v1529 = vpack.c.b16 %v1144, %v1139
        %v1530 = vpack.c.b16 %v1145, %v1140
        %v1531 = vpack.c.b16 %v1151, %v1146
        %v1532 = vpack.c.b16 %v1152, %v1147
        %v1533 = vpack.c.b16 %v1153, %v1148
        %v1534 = vpack.c.b16 %v1154, %v1149
        %v1535 = vpack.c.b16 %v1155, %v1150
        %v1536 = vpack.c.b16 %v1161, %v1156
        %v1537 = vpack.c.b16 %v1162, %v1157
        %v1538 = vpack.c.b16 %v1163, %v1158
        %v1539 = vpack.c.b16 %v1164, %v1159
        %v1540 = vpack.c.b16 %v1165, %v1160
        %v1541 = vpack.c.b16 %v1171, %v1166
        %v1542 = vpack.c.b16 %v1172, %v1167
        %v1543 = vpack.c.b16 %v1173, %v1168
        %v1544 = vpack.c.b16 %v1174, %v1169
        %v1545 = vpack.c.b16 %v1175, %v1170
        %v1546 = vpack.c.b16 %v1181, %v1176
        %v1547 = vpack.c.b16 %v1182, %v1177
        %v1548 = vpack.c.b16 %v1183, %v1178
        %v1549 = vpack.c.b16 %v1184, %v1179
        %v1550 = vpack.c.b16 %v1185, %v1180
        %v1551 = vpack.c.b16 %v1191, %v1186
        %v1552 = vpack.c.b16 %v1192, %v1187
        %v1553 = vpack.c.b16 %v1193, %v1188
        %v1554 = vpack.c.b16 %v1194, %v1189
        %v1555 = vpack.c.b16 %v1195, %v1190
        %v1556 = vpack.c.b16 %v1201, %v1196
        %v1557 = vpack.c.b16 %v1202, %v1197
        %v1558 = vpack.c.b16 %v1203, %v1198
        %v1559 = vpack.c.b16 %v1204, %v1199
        %v1560 = vpack.c.b16 %v1205, %v1200
        %v1561 = vpack.c.b16 %v1211, %v1206
        %v1562 = vpack.c.b16 %v1212, %v1207
        %v1563 = vpack.c.b16 %v1213, %v1208
        %v1564 = vpack.c.b16 %v1214, %v1209
        %v1565 = vpack.c.b16 %v1215, %v1210
        %v1566 = vpack.c.b16 %v1221, %v1216
        %v1567 = vpack.c.b16 %v1222, %v1217
        %v1568 = vpack.c.b16 %v1223, %v1218
        %v1569 = vpack.c.b16 %v1224, %v1219
        %v1570 = vpack.c.b16 %v1225, %v1220
        %v1571 = vpack.c.b16 %v1231, %v1226
        %v1572 = vpack.c.b16 %v1232, %v1227
        %v1573 = vpack.c.b16 %v1233, %v1228
        %v1574 = vpack.c.b16 %v1234, %v1229
        %v1575 = vpack.c.b16 %v1235, %v1230
        %v1576 = vpack.c.b16 %v1241, %v1236
        %v1577 = vpack.c.b16 %v1242, %v1237
        %v1578 = vpack.c.b16 %v1243, %v1238
        %v1579 = vpack.c.b16 %v1244, %v1239
        %v1580 = vpack.c.b16 %v1245, %v1240
        %v1581 = vpack.c.b16 %v1251, %v1246
        %v1582 = vpack.c.b16 %v1252, %v1247
        %v1583 = vpack.c.b16 %v1253, %v1248
        %v1584 = vpack.c.b16 %v1254, %v1249
        %v1585 = vpack.c.b16 %v1255, %v1250
        %v1586 = vpack.c.b16 %v1261, %v1256
        %v1587 = vpack.c.b16 %v1262, %v1257
        %v1588 = vpack.c.b16 %v1263, %v1258
        %v1589 = vpack.c.b16 %v1264, %v1259
        %v1590 = vpack.c.b16 %v1265, %v1260
        %v1591 = vpack.c.b16 %v1271, %v1266
        %v1592 = vpack.c.b16 %v1272, %v1267
        %v1593 = vpack.c.b16 %v1273, %v1268
        %v1594 = vpack.c.b16 %v1274, %v1269
        %v1595 = vpack.c.b16 %v1275, %v1270
        %v1596 = vpack.c.b16 %v1281, %v1276
        %v1597 = vpack.c.b16 %v1282, %v1277
        %v1598 = vpack.c.b16 %v1283, %v1278
        %v1599 = vpack.c.b16 %v1284, %v1279
        %v1600 = vpack.c.b16 %v1285, %v1280
        %v1601 = vpack.c.b16 %v1291, %v1286
        %v1602 = vpack.c.b16 %v1292, %v1287
        %v1603 = vpack.c.b16 %v1293, %v1288
        %v1604 = vpack.c.b16 %v1294, %v1289
        %v1605 = vpack.c.b16 %v1295, %v1290
        %v1606 = vpack.c.b16 %v1301, %v1296
        %v1607 = vpack.c.b16 %v1302, %v1297
        %v1608 = vpack.c.b16 %v1303, %v1298
        %v1609 = vpack.c.b16 %v1304, %v1299
        %v1610 = vpack.c.b16 %v1305, %v1300
        %v1611 = vpack.c.b16 %v1311, %v1306
        %v1612 = vpack.c.b16 %v1312, %v1307
        %v1613 = vpack.c.b16 %v1313, %v1308
        %v1614 = vpack.c.b16 %v1314, %v1309
        %v1615 = vpack.c.b16 %v1315, %v1310
        %v1616 = vpack.c.b16 %v1321, %v1316
        %v1617 = vpack.c.b16 %v1322, %v1317
        %v1618 = vpack.c.b16 %v1323, %v1318
        %v1619 = vpack.c.b16 %v1324, %v1319
        %v1620 = vpack.c.b16 %v1325, %v1320
        %v1621 = vpack.c.b16 %v1331, %v1326
        %v1622 = vpack.c.b16 %v1332, %v1327
        %v1623 = vpack.c.b16 %v1333, %v1328
        %v1624 = vpack.c.b16 %v1334, %v1329
        %v1625 = vpack.c.b16 %v1335, %v1330
        %v1626 = vpack.c.b16 %v1341, %v1336
        %v1627 = vpack.c.b16 %v1342, %v1337
        %v1628 = vpack.c.b16 %v1343, %v1338
        %v1629 = vpack.c.b16 %v1344, %v1339
        %v1630 = vpack.c.b16 %v1345, %v1340
        %v1631 = vpack.c.b16 %v1351, %v1346
        %v1632 = vpack.c.b16 %v1352, %v1347
        %v1633 = vpack.c.b16 %v1353, %v1348
        %v1634 = vpack.c.b16 %v1354, %v1349
        %v1635 = vpack.c.b16 %v1355, %v1350
        %v1636 = vpack.c.b16 %v1361, %v1356
        %v1637 = vpack.c.b16 %v1362, %v1357
        %v1638 = vpack.c.b16 %v1363, %v1358
        %v1639 = vpack.c.b16 %v1364, %v1359
        %v1640 = vpack.c.b16 %v1365, %v1360
        %v1641 = vpack.c.b16 %v1371, %v1366
        %v1642 = vpack.c.b16 %v1372, %v1367
        %v1643 = vpack.c.b16 %v1373, %v1368
        %v1644 = vpack.c.b16 %v1374, %v1369
        %v1645 = vpack.c.b16 %v1375, %v1370
        %v1646 = vpack.c.b16 %v1381, %v1376
        %v1647 = vpack.c.b16 %v1382, %v1377
        %v1648 = vpack.c.b16 %v1383, %v1378
        %v1649 = vpack.c.b16 %v1384, %v1379
        %v1650 = vpack.c.b16 %v1385, %v1380
        %v1651 = vpack.c.b16 %v1391, %v1386
        %v1652 = vpack.c.b16 %v1392, %v1387
        %v1653 = vpack.c.b16 %v1393, %v1388
        %v1654 = vpack.c.b16 %v1394, %v1389
        %v1655 = vpack.c.b16 %v1395, %v1390
        %v1656 = vpack.c.b16 %v1401, %v1396
        %v1657 = vpack.c.b16 %v1402, %v1397
        %v1658 = vpack.c.b16 %v1403, %v1398
        %v1659 = vpack.c.b16 %v1404, %v1399
        %v1660 = vpack.c.b16 %v1405, %v1400
        %v1661 = vpack.c.b16 %v1411, %v1406
        %v1662 = vpack.c.b16 %v1412, %v1407
        %v1663 = vpack.c.b16 %v1413, %v1408
        %v1664 = vpack.c.b16 %v1414, %v1409
        %v1665 = vpack.c.b16 %v1415, %v1410
        %v1666 = vpack.c.b16 %v1421, %v1416
        %v1667 = vpack.c.b16 %v1422, %v1417
        %v1668 = vpack.c.b16 %v1423, %v1418
        %v1669 = vpack.c.b16 %v1424, %v1419
        %v1670 = vpack.c.b16 %v1425, %v1420
        %vm1916 = vcmask 130048
        %v1918 = vsel %vm1916, %v635, 0
        %1920 = vmatprep.subr.bf16.mxu0 %v1427
        %1921 = vmatpush1.bf16.msra.mxu0 %v1426
        %1922 = vmatprep.subr.bf16.mxu0 %v1432
        %1923 = vmatpush1.bf16.msra.mxu0 %v1431
        %1924 = vmatprep.subr.bf16.mxu0 %v1437
        %1925 = vmatpush1.bf16.msra.mxu0 %v1436
        %1926 = vmatprep.subr.bf16.mxu0 %v1442
        %1927 = vmatpush1.bf16.msra.mxu0 %v1441
        %1928 = vmatprep.subr.bf16.mxu0 %v1447
        %1929 = vmatpush1.bf16.msra.mxu0 %v1446
        %1930 = vmatprep.subr.bf16.mxu0 %v1452
        %1931 = vmatpush1.bf16.msra.mxu0 %v1451
        %1932 = vmatprep.subr.bf16.mxu0 %v1457
        %1933 = vmatpush1.bf16.msra.mxu0 %v1456
        %1934 = vmatprep.subr.bf16.mxu0 %v1462
        %1935 = vmatpush1.bf16.msra.mxu0 %v1461
        %1936 = vmatprep.subr.bf16.mxu0 %v1467
        %1937 = vmatpush1.bf16.msra.mxu0 %v1466
        %1938 = vmatprep.subr.bf16.mxu0 %v1472
        %1939 = vmatpush1.bf16.msra.mxu0 %v1471
        %1940 = vmatprep.subr.bf16.mxu0 %v1477
        %1941 = vmatpush1.bf16.msra.mxu0 %v1476
        %1942 = vmatprep.subr.bf16.mxu0 %v1482
        %1943 = vmatpush1.bf16.msra.mxu0 %v1481
        %1944 = vmatprep.subr.bf16.mxu0 %v1487
        %1945 = vmatpush1.bf16.msra.mxu0 %v1486
        %1946 = vmatprep.subr.bf16.mxu0 %v1492
        %1947 = vmatpush1.bf16.msra.mxu0 %v1491
        %1948 = vmatprep.subr.bf16.mxu0 %v1497
        %1949 = vmatpush1.bf16.msra.mxu0 %v1496
        %1950 = vmatprep.subr.bf16.mxu0 %v1502
        %1951 = vmatpush1.bf16.msra.mxu0 %v1501
        %1952 = vmatprep.mubr.bf16.mxu0 %v630
        %1953 = vmatmul.mubr.bf16.gmra.mrb[0].mxu0 %v629
        %v1954 = vpop.f32.mrb[0].mxu0
        %v1955 = vadd.f32 %v596, %v1954
        %v1956 = vpop.f32.mrb[0].mxu0
        %v1957 = vadd.f32 %v600, %v1956
        %v1958 = vpop.f32.mrb[0].mxu0
        %v1959 = vpop.f32.mrb[0].mxu0
        %1960 = vdwg.mxu0
        %1961 = vmatprep.subr.bf16.mxu0 %v1507
        %1962 = vmatpush1.bf16.msra.mxu0 %v1506
        %1963 = vmatprep.subr.bf16.mxu0 %v1512
        %1964 = vmatpush1.bf16.msra.mxu0 %v1511
        %1965 = vmatprep.subr.bf16.mxu0 %v1517
        %1966 = vmatpush1.bf16.msra.mxu0 %v1516
        %1967 = vmatprep.subr.bf16.mxu0 %v1522
        %1968 = vmatpush1.bf16.msra.mxu0 %v1521
        %1969 = vmatprep.subr.bf16.mxu0 %v1527
        %1970 = vmatpush1.bf16.msra.mxu0 %v1526
        %1971 = vmatprep.subr.bf16.mxu0 %v1532
        %1972 = vmatpush1.bf16.msra.mxu0 %v1531
        %1973 = vmatprep.subr.bf16.mxu0 %v1537
        %1974 = vmatpush1.bf16.msra.mxu0 %v1536
        %1975 = vmatprep.subr.bf16.mxu0 %v1542
        %1976 = vmatpush1.bf16.msra.mxu0 %v1541
        %1977 = vmatprep.subr.bf16.mxu0 %v1547
        %1978 = vmatpush1.bf16.msra.mxu0 %v1546
        %1979 = vmatprep.subr.bf16.mxu0 %v1552
        %1980 = vmatpush1.bf16.msra.mxu0 %v1551
        %1981 = vmatprep.subr.bf16.mxu0 %v1557
        %1982 = vmatpush1.bf16.msra.mxu0 %v1556
        %1983 = vmatprep.subr.bf16.mxu0 %v1562
        %1984 = vmatpush1.bf16.msra.mxu0 %v1561
        %1985 = vmatprep.subr.bf16.mxu0 %v1567
        %1986 = vmatpush1.bf16.msra.mxu0 %v1566
        %1987 = vmatprep.subr.bf16.mxu0 %v1572
        %1988 = vmatpush1.bf16.msra.mxu0 %v1571
        %1989 = vmatprep.subr.bf16.mxu0 %v1577
        %1990 = vmatpush1.bf16.msra.mxu0 %v1576
        %1991 = vmatprep.subr.bf16.mxu0 %v1582
        %1992 = vmatpush1.bf16.msra.mxu0 %v1581
        %1993 = vmatprep.mubr.bf16.mxu0 %v632
        %1994 = vmatmul.mubr.bf16.gmra.mrb[0].mxu0 %v631
        %v1995 = vpop.f32.mrb[0].mxu0
        %v1996 = vadd.f32 %v1955, %v1995
        %v1997 = vpop.f32.mrb[0].mxu0
        %v1998 = vadd.f32 %v1957, %v1997
        %v1999 = vpop.f32.mrb[0].mxu0
        %v2000 = vpop.f32.mrb[0].mxu0
        %2001 = vdwg.mxu0
        %2002 = vmatprep.subr.bf16.mxu0 %v1587
        %2003 = vmatpush1.bf16.msra.mxu0 %v1586
        %2004 = vmatprep.subr.bf16.mxu0 %v1592
        %2005 = vmatpush1.bf16.msra.mxu0 %v1591
        %2006 = vmatprep.subr.bf16.mxu0 %v1597
        %2007 = vmatpush1.bf16.msra.mxu0 %v1596
        %2008 = vmatprep.subr.bf16.mxu0 %v1602
        %2009 = vmatpush1.bf16.msra.mxu0 %v1601
        %2010 = vmatprep.subr.bf16.mxu0 %v1607
        %2011 = vmatpush1.bf16.msra.mxu0 %v1606
        %2012 = vmatprep.subr.bf16.mxu0 %v1612
        %2013 = vmatpush1.bf16.msra.mxu0 %v1611
        %2014 = vmatprep.subr.bf16.mxu0 %v1617
        %2015 = vmatpush1.bf16.msra.mxu0 %v1616
        %2016 = vmatprep.subr.bf16.mxu0 %v1622
        %2017 = vmatpush1.bf16.msra.mxu0 %v1621
        %2018 = vmatprep.subr.bf16.mxu0 %v1627
        %2019 = vmatpush1.bf16.msra.mxu0 %v1626
        %2020 = vmatprep.subr.bf16.mxu0 %v1632
        %2021 = vmatpush1.bf16.msra.mxu0 %v1631
        %2022 = vmatprep.subr.bf16.mxu0 %v1637
        %2023 = vmatpush1.bf16.msra.mxu0 %v1636
        %2024 = vmatprep.subr.bf16.mxu0 %v1642
        %2025 = vmatpush1.bf16.msra.mxu0 %v1641
        %2026 = vmatprep.subr.bf16.mxu0 %v1647
        %2027 = vmatpush1.bf16.msra.mxu0 %v1646
        %2028 = vmatprep.subr.bf16.mxu0 %v1652
        %2029 = vmatpush1.bf16.msra.mxu0 %v1651
        %2030 = vmatprep.subr.bf16.mxu0 %v1657
        %2031 = vmatpush1.bf16.msra.mxu0 %v1656
        %2032 = vmatprep.subr.bf16.mxu0 %v1662
        %2033 = vmatpush1.bf16.msra.mxu0 %v1661
        %2034 = vmatprep.mubr.bf16.mxu0 %v634
        %2035 = vmatmul.mubr.bf16.gmra.mrb[0].mxu0 %v633
        %v2036 = vpop.f32.mrb[0].mxu0
        %v2037 = vadd.f32 %v1996, %v2036
        %v2038 = vpop.f32.mrb[0].mxu0
        %v2039 = vadd.f32 %v1998, %v2038
        %v2040 = vpop.f32.mrb[0].mxu0
        %v2041 = vpop.f32.mrb[0].mxu0
        %2042 = vdwg.mxu0
        %2043 = vmatprep.subr.bf16.mxu0 %v1667
        %2044 = vmatpush1.bf16.msra.mxu0 %v1666
        %2045 = vmatprep.subr.bf16.mxu0 0
        %2046 = vmatpush1.bf16.msra.mxu0 0
        %2047 = vmatprep.subr.bf16.mxu0 0
        %2048 = vmatpush1.bf16.msra.mxu0 0
        %2049 = vmatprep.subr.bf16.mxu0 0
        %2050 = vmatpush1.bf16.msra.mxu0 0
        %2051 = vmatprep.subr.bf16.mxu0 0
        %2052 = vmatpush1.bf16.msra.mxu0 0
        %2053 = vmatprep.subr.bf16.mxu0 0
        %2054 = vmatpush1.bf16.msra.mxu0 0
        %2055 = vmatprep.subr.bf16.mxu0 0
        %2056 = vmatpush1.bf16.msra.mxu0 0
        %2057 = vmatprep.subr.bf16.mxu0 0
        %2058 = vmatpush1.bf16.msra.mxu0 0
        %2059 = vmatprep.subr.bf16.mxu0 0
        %2060 = vmatpush1.bf16.msra.mxu0 0
        %2061 = vmatprep.subr.bf16.mxu0 0
        %2062 = vmatpush1.bf16.msra.mxu0 0
        %2063 = vmatprep.subr.bf16.mxu0 0
        %2064 = vmatpush1.bf16.msra.mxu0 0
        %2065 = vmatprep.subr.bf16.mxu0 0
        %2066 = vmatpush1.bf16.msra.mxu0 0
        %2067 = vmatprep.subr.bf16.mxu0 0
        %2068 = vmatpush1.bf16.msra.mxu0 0
        %2069 = vmatprep.subr.bf16.mxu0 0
        %2070 = vmatpush1.bf16.msra.mxu0 0
        %2071 = vmatprep.subr.bf16.mxu0 0
        %2072 = vmatpush1.bf16.msra.mxu0 0
        %2073 = vmatprep.subr.bf16.mxu0 0
        %2074 = vmatpush1.bf16.msra.mxu0 0
        %2075 = vmatprep.mubr.bf16.mxu0 0
        %2076 = vmatmul.mubr.bf16.gmra.mrb[0].mxu0 %v1918
        %v2077 = vpop.f32.mrb[0].mxu0
        %v2078 = vadd.f32 %v2037, %v2077
        %v2079 = vpop.f32.mrb[0].mxu0
        %v2080 = vadd.f32 %v2039, %v2079
        %v2081 = vpop.f32.mrb[0].mxu0
        %v2082 = vpop.f32.mrb[0].mxu0
        %2083 = vdwg.mxu0
        %2084 = vmatprep.subr.bf16.mxu0 %v1429
        %2085 = vmatpush1.bf16.msra.mxu0 %v1428
        %2086 = vmatprep.subr.bf16.mxu0 %v1434
        %2087 = vmatpush1.bf16.msra.mxu0 %v1433
        %2088 = vmatprep.subr.bf16.mxu0 %v1439
        %2089 = vmatpush1.bf16.msra.mxu0 %v1438
        %2090 = vmatprep.subr.bf16.mxu0 %v1444
        %2091 = vmatpush1.bf16.msra.mxu0 %v1443
        %2092 = vmatprep.subr.bf16.mxu0 %v1449
        %2093 = vmatpush1.bf16.msra.mxu0 %v1448
        %2094 = vmatprep.subr.bf16.mxu0 %v1454
        %2095 = vmatpush1.bf16.msra.mxu0 %v1453
        %2096 = vmatprep.subr.bf16.mxu0 %v1459
        %2097 = vmatpush1.bf16.msra.mxu0 %v1458
        %2098 = vmatprep.subr.bf16.mxu0 %v1464
        %2099 = vmatpush1.bf16.msra.mxu0 %v1463
        %2100 = vmatprep.subr.bf16.mxu0 %v1469
        %2101 = vmatpush1.bf16.msra.mxu0 %v1468
        %2102 = vmatprep.subr.bf16.mxu0 %v1474
        %2103 = vmatpush1.bf16.msra.mxu0 %v1473
        %2104 = vmatprep.subr.bf16.mxu0 %v1479
        %2105 = vmatpush1.bf16.msra.mxu0 %v1478
        %2106 = vmatprep.subr.bf16.mxu0 %v1484
        %2107 = vmatpush1.bf16.msra.mxu0 %v1483
        %2108 = vmatprep.subr.bf16.mxu0 %v1489
        %2109 = vmatpush1.bf16.msra.mxu0 %v1488
        %2110 = vmatprep.subr.bf16.mxu0 %v1494
        %2111 = vmatpush1.bf16.msra.mxu0 %v1493
        %2112 = vmatprep.subr.bf16.mxu0 %v1499
        %2113 = vmatpush1.bf16.msra.mxu0 %v1498
        %2114 = vmatprep.subr.bf16.mxu0 %v1504
        %2115 = vmatpush1.bf16.msra.mxu0 %v1503
        %2116 = vmatprep.mubr.bf16.mxu0 %v630
        %2117 = vmatmul.mubr.bf16.gmra.mrb[0].mxu0 %v629
        %v2118 = vpop.f32.mrb[0].mxu0
        %v2119 = vadd.f32 %v604, %v2118
        %v2120 = vpop.f32.mrb[0].mxu0
        %v2121 = vadd.f32 %v608, %v2120
        %v2122 = vpop.f32.mrb[0].mxu0
        %v2123 = vpop.f32.mrb[0].mxu0
        %2124 = vdwg.mxu0
        %2125 = vmatprep.subr.bf16.mxu0 %v1509
        %2126 = vmatpush1.bf16.msra.mxu0 %v1508
        %2127 = vmatprep.subr.bf16.mxu0 %v1514
        %2128 = vmatpush1.bf16.msra.mxu0 %v1513
        %2129 = vmatprep.subr.bf16.mxu0 %v1519
        %2130 = vmatpush1.bf16.msra.mxu0 %v1518
        %2131 = vmatprep.subr.bf16.mxu0 %v1524
        %2132 = vmatpush1.bf16.msra.mxu0 %v1523
        %2133 = vmatprep.subr.bf16.mxu0 %v1529
        %2134 = vmatpush1.bf16.msra.mxu0 %v1528
        %2135 = vmatprep.subr.bf16.mxu0 %v1534
        %2136 = vmatpush1.bf16.msra.mxu0 %v1533
        %2137 = vmatprep.subr.bf16.mxu0 %v1539
        %2138 = vmatpush1.bf16.msra.mxu0 %v1538
        %2139 = vmatprep.subr.bf16.mxu0 %v1544
        %2140 = vmatpush1.bf16.msra.mxu0 %v1543
        %2141 = vmatprep.subr.bf16.mxu0 %v1549
        %2142 = vmatpush1.bf16.msra.mxu0 %v1548
        %2143 = vmatprep.subr.bf16.mxu0 %v1554
        %2144 = vmatpush1.bf16.msra.mxu0 %v1553
        %2145 = vmatprep.subr.bf16.mxu0 %v1559
        %2146 = vmatpush1.bf16.msra.mxu0 %v1558
        %2147 = vmatprep.subr.bf16.mxu0 %v1564
        %2148 = vmatpush1.bf16.msra.mxu0 %v1563
        %2149 = vmatprep.subr.bf16.mxu0 %v1569
        %2150 = vmatpush1.bf16.msra.mxu0 %v1568
        %2151 = vmatprep.subr.bf16.mxu0 %v1574
        %2152 = vmatpush1.bf16.msra.mxu0 %v1573
        %2153 = vmatprep.subr.bf16.mxu0 %v1579
        %2154 = vmatpush1.bf16.msra.mxu0 %v1578
        %2155 = vmatprep.subr.bf16.mxu0 %v1584
        %2156 = vmatpush1.bf16.msra.mxu0 %v1583
        %2157 = vmatprep.mubr.bf16.mxu0 %v632
        %2158 = vmatmul.mubr.bf16.gmra.mrb[0].mxu0 %v631
        %v2159 = vpop.f32.mrb[0].mxu0
        %v2160 = vadd.f32 %v2119, %v2159
        %v2161 = vpop.f32.mrb[0].mxu0
        %v2162 = vadd.f32 %v2121, %v2161
        %v2163 = vpop.f32.mrb[0].mxu0
        %v2164 = vpop.f32.mrb[0].mxu0
        %2165 = vdwg.mxu0
        %2166 = vmatprep.subr.bf16.mxu0 %v1589
        %2167 = vmatpush1.bf16.msra.mxu0 %v1588
        %2168 = vmatprep.subr.bf16.mxu0 %v1594
        %2169 = vmatpush1.bf16.msra.mxu0 %v1593
        %2170 = vmatprep.subr.bf16.mxu0 %v1599
        %2171 = vmatpush1.bf16.msra.mxu0 %v1598
        %2172 = vmatprep.subr.bf16.mxu0 %v1604
        %2173 = vmatpush1.bf16.msra.mxu0 %v1603
        %2174 = vmatprep.subr.bf16.mxu0 %v1609
        %2175 = vmatpush1.bf16.msra.mxu0 %v1608
        %2176 = vmatprep.subr.bf16.mxu0 %v1614
        %2177 = vmatpush1.bf16.msra.mxu0 %v1613
        %2178 = vmatprep.subr.bf16.mxu0 %v1619
        %2179 = vmatpush1.bf16.msra.mxu0 %v1618
        %2180 = vmatprep.subr.bf16.mxu0 %v1624
        %2181 = vmatpush1.bf16.msra.mxu0 %v1623
        %2182 = vmatprep.subr.bf16.mxu0 %v1629
        %2183 = vmatpush1.bf16.msra.mxu0 %v1628
        %2184 = vmatprep.subr.bf16.mxu0 %v1634
        %2185 = vmatpush1.bf16.msra.mxu0 %v1633
        %2186 = vmatprep.subr.bf16.mxu0 %v1639
        %2187 = vmatpush1.bf16.msra.mxu0 %v1638
        %2188 = vmatprep.subr.bf16.mxu0 %v1644
        %2189 = vmatpush1.bf16.msra.mxu0 %v1643
        %2190 = vmatprep.subr.bf16.mxu0 %v1649
        %2191 = vmatpush1.bf16.msra.mxu0 %v1648
        %2192 = vmatprep.subr.bf16.mxu0 %v1654
        %2193 = vmatpush1.bf16.msra.mxu0 %v1653
        %2194 = vmatprep.subr.bf16.mxu0 %v1659
        %2195 = vmatpush1.bf16.msra.mxu0 %v1658
        %2196 = vmatprep.subr.bf16.mxu0 %v1664
        %2197 = vmatpush1.bf16.msra.mxu0 %v1663
        %2198 = vmatprep.mubr.bf16.mxu0 %v634
        %2199 = vmatmul.mubr.bf16.gmra.mrb[0].mxu0 %v633
        %v2200 = vpop.f32.mrb[0].mxu0
        %v2201 = vadd.f32 %v2160, %v2200
        %v2202 = vpop.f32.mrb[0].mxu0
        %v2203 = vadd.f32 %v2162, %v2202
        %v2204 = vpop.f32.mrb[0].mxu0
        %v2205 = vpop.f32.mrb[0].mxu0
        %2206 = vdwg.mxu0
        %2207 = vmatprep.subr.bf16.mxu0 %v1669
        %2208 = vmatpush1.bf16.msra.mxu0 %v1668
        %2209 = vmatprep.subr.bf16.mxu0 0
        %2210 = vmatpush1.bf16.msra.mxu0 0
        %2211 = vmatprep.subr.bf16.mxu0 0
        %2212 = vmatpush1.bf16.msra.mxu0 0
        %2213 = vmatprep.subr.bf16.mxu0 0
        %2214 = vmatpush1.bf16.msra.mxu0 0
        %2215 = vmatprep.subr.bf16.mxu0 0
        %2216 = vmatpush1.bf16.msra.mxu0 0
        %2217 = vmatprep.subr.bf16.mxu0 0
        %2218 = vmatpush1.bf16.msra.mxu0 0
        %2219 = vmatprep.subr.bf16.mxu0 0
        %2220 = vmatpush1.bf16.msra.mxu0 0
        %2221 = vmatprep.subr.bf16.mxu0 0
        %2222 = vmatpush1.bf16.msra.mxu0 0
        %2223 = vmatprep.subr.bf16.mxu0 0
        %2224 = vmatpush1.bf16.msra.mxu0 0
        %2225 = vmatprep.subr.bf16.mxu0 0
        %2226 = vmatpush1.bf16.msra.mxu0 0
        %2227 = vmatprep.subr.bf16.mxu0 0
        %2228 = vmatpush1.bf16.msra.mxu0 0
        %2229 = vmatprep.subr.bf16.mxu0 0
        %2230 = vmatpush1.bf16.msra.mxu0 0
        %2231 = vmatprep.subr.bf16.mxu0 0
        %2232 = vmatpush1.bf16.msra.mxu0 0
        %2233 = vmatprep.subr.bf16.mxu0 0
        %2234 = vmatpush1.bf16.msra.mxu0 0
        %2235 = vmatprep.subr.bf16.mxu0 0
        %2236 = vmatpush1.bf16.msra.mxu0 0
        %2237 = vmatprep.subr.bf16.mxu0 0
        %2238 = vmatpush1.bf16.msra.mxu0 0
        %2239 = vmatprep.mubr.bf16.mxu0 0
        %2240 = vmatmul.mubr.bf16.gmra.mrb[0].mxu0 %v1918
        %v2241 = vpop.f32.mrb[0].mxu0
        %v2242 = vadd.f32 %v2201, %v2241
        %v2243 = vpop.f32.mrb[0].mxu0
        %v2244 = vadd.f32 %v2203, %v2243
        %v2245 = vpop.f32.mrb[0].mxu0
        %v2246 = vpop.f32.mrb[0].mxu0
        %2247 = vdwg.mxu0
        %2248 = vmatprep.subr.bf16.mxu0 0
        %2249 = vmatpush1.bf16.msra.mxu0 %v1430
        %2250 = vmatprep.subr.bf16.mxu0 0
        %2251 = vmatpush1.bf16.msra.mxu0 %v1435
        %2252 = vmatprep.subr.bf16.mxu0 0
        %2253 = vmatpush1.bf16.msra.mxu0 %v1440
        %2254 = vmatprep.subr.bf16.mxu0 0
        %2255 = vmatpush1.bf16.msra.mxu0 %v1445
        %2256 = vmatprep.subr.bf16.mxu0 0
        %2257 = vmatpush1.bf16.msra.mxu0 %v1450
        %2258 = vmatprep.subr.bf16.mxu0 0
        %2259 = vmatpush1.bf16.msra.mxu0 %v1455
        %2260 = vmatprep.subr.bf16.mxu0 0
        %2261 = vmatpush1.bf16.msra.mxu0 %v1460
        %2262 = vmatprep.subr.bf16.mxu0 0
        %2263 = vmatpush1.bf16.msra.mxu0 %v1465
        %2264 = vmatprep.subr.bf16.mxu0 0
        %2265 = vmatpush1.bf16.msra.mxu0 %v1470
        %2266 = vmatprep.subr.bf16.mxu0 0
        %2267 = vmatpush1.bf16.msra.mxu0 %v1475
        %2268 = vmatprep.subr.bf16.mxu0 0
        %2269 = vmatpush1.bf16.msra.mxu0 %v1480
        %2270 = vmatprep.subr.bf16.mxu0 0
        %2271 = vmatpush1.bf16.msra.mxu0 %v1485
        %2272 = vmatprep.subr.bf16.mxu0 0
        %2273 = vmatpush1.bf16.msra.mxu0 %v1490
        %2274 = vmatprep.subr.bf16.mxu0 0
        %2275 = vmatpush1.bf16.msra.mxu0 %v1495
        %2276 = vmatprep.subr.bf16.mxu0 0
        %2277 = vmatpush1.bf16.msra.mxu0 %v1500
        %2278 = vmatprep.subr.bf16.mxu0 0
        %2279 = vmatpush1.bf16.msra.mxu0 %v1505
        %2280 = vmatprep.mubr.bf16.mxu0 %v630
        %2281 = vmatmul.mubr.bf16.gmra.mrb[0].mxu0 %v629
        %v2282 = vpop.f32.mrb[0].mxu0
        %v2283 = vadd.f32 %v612, %v2282
        %v2284 = vpop.f32.mrb[0].mxu0
        %v2285 = vpop.f32.mrb[0].mxu0
        %v2286 = vpop.f32.mrb[0].mxu0
        %2287 = vdwg.mxu0
        %2288 = vmatprep.subr.bf16.mxu0 0
        %2289 = vmatpush1.bf16.msra.mxu0 %v1510
        %2290 = vmatprep.subr.bf16.mxu0 0
        %2291 = vmatpush1.bf16.msra.mxu0 %v1515
        %2292 = vmatprep.subr.bf16.mxu0 0
        %2293 = vmatpush1.bf16.msra.mxu0 %v1520
        %2294 = vmatprep.subr.bf16.mxu0 0
        %2295 = vmatpush1.bf16.msra.mxu0 %v1525
        %2296 = vmatprep.subr.bf16.mxu0 0
        %2297 = vmatpush1.bf16.msra.mxu0 %v1530
        %2298 = vmatprep.subr.bf16.mxu0 0
        %2299 = vmatpush1.bf16.msra.mxu0 %v1535
        %2300 = vmatprep.subr.bf16.mxu0 0
        %2301 = vmatpush1.bf16.msra.mxu0 %v1540
        %2302 = vmatprep.subr.bf16.mxu0 0
        %2303 = vmatpush1.bf16.msra.mxu0 %v1545
        %2304 = vmatprep.subr.bf16.mxu0 0
        %2305 = vmatpush1.bf16.msra.mxu0 %v1550
        %2306 = vmatprep.subr.bf16.mxu0 0
        %2307 = vmatpush1.bf16.msra.mxu0 %v1555
        %2308 = vmatprep.subr.bf16.mxu0 0
        %2309 = vmatpush1.bf16.msra.mxu0 %v1560
        %2310 = vmatprep.subr.bf16.mxu0 0
        %2311 = vmatpush1.bf16.msra.mxu0 %v1565
        %2312 = vmatprep.subr.bf16.mxu0 0
        %2313 = vmatpush1.bf16.msra.mxu0 %v1570
        %2314 = vmatprep.subr.bf16.mxu0 0
        %2315 = vmatpush1.bf16.msra.mxu0 %v1575
        %2316 = vmatprep.subr.bf16.mxu0 0
        %2317 = vmatpush1.bf16.msra.mxu0 %v1580
        %2318 = vmatprep.subr.bf16.mxu0 0
        %2319 = vmatpush1.bf16.msra.mxu0 %v1585
        %2320 = vmatprep.mubr.bf16.mxu0 %v632
        %2321 = vmatmul.mubr.bf16.gmra.mrb[0].mxu0 %v631
        %v2322 = vpop.f32.mrb[0].mxu0
        %v2323 = vadd.f32 %v2283, %v2322
        %v2324 = vpop.f32.mrb[0].mxu0
        %v2325 = vpop.f32.mrb[0].mxu0
        %v2326 = vpop.f32.mrb[0].mxu0
        %2327 = vdwg.mxu0
        %2328 = vmatprep.subr.bf16.mxu0 0
        %2329 = vmatpush1.bf16.msra.mxu0 %v1590
        %2330 = vmatprep.subr.bf16.mxu0 0
        %2331 = vmatpush1.bf16.msra.mxu0 %v1595
        %2332 = vmatprep.subr.bf16.mxu0 0
        %2333 = vmatpush1.bf16.msra.mxu0 %v1600
        %2334 = vmatprep.subr.bf16.mxu0 0
        %2335 = vmatpush1.bf16.msra.mxu0 %v1605
        %2336 = vmatprep.subr.bf16.mxu0 0
        %2337 = vmatpush1.bf16.msra.mxu0 %v1610
        %2338 = vmatprep.subr.bf16.mxu0 0
        %2339 = vmatpush1.bf16.msra.mxu0 %v1615
        %2340 = vmatprep.subr.bf16.mxu0 0
        %2341 = vmatpush1.bf16.msra.mxu0 %v1620
        %2342 = vmatprep.subr.bf16.mxu0 0
        %2343 = vmatpush1.bf16.msra.mxu0 %v1625
        %2344 = vmatprep.subr.bf16.mxu0 0
        %2345 = vmatpush1.bf16.msra.mxu0 %v1630
        %2346 = vmatprep.subr.bf16.mxu0 0
        %2347 = vmatpush1.bf16.msra.mxu0 %v1635
        %2348 = vmatprep.subr.bf16.mxu0 0
        %2349 = vmatpush1.bf16.msra.mxu0 %v1640
        %2350 = vmatprep.subr.bf16.mxu0 0
        %2351 = vmatpush1.bf16.msra.mxu0 %v1645
        %2352 = vmatprep.subr.bf16.mxu0 0
        %2353 = vmatpush1.bf16.msra.mxu0 %v1650
        %2354 = vmatprep.subr.bf16.mxu0 0
        %2355 = vmatpush1.bf16.msra.mxu0 %v1655
        %2356 = vmatprep.subr.bf16.mxu0 0
        %2357 = vmatpush1.bf16.msra.mxu0 %v1660
        %2358 = vmatprep.subr.bf16.mxu0 0
        %2359 = vmatpush1.bf16.msra.mxu0 %v1665
        %2360 = vmatprep.mubr.bf16.mxu0 %v634
        %2361 = vmatmul.mubr.bf16.gmra.mrb[0].mxu0 %v633
        %v2362 = vpop.f32.mrb[0].mxu0
        %v2363 = vadd.f32 %v2323, %v2362
        %v2364 = vpop.f32.mrb[0].mxu0
        %v2365 = vpop.f32.mrb[0].mxu0
        %v2366 = vpop.f32.mrb[0].mxu0
        %2367 = vdwg.mxu0
        %2368 = vmatprep.subr.bf16.mxu0 0
        %2369 = vmatpush1.bf16.msra.mxu0 %v1670
        %2370 = vmatprep.subr.bf16.mxu0 0
        %2371 = vmatpush1.bf16.msra.mxu0 0
        %2372 = vmatprep.subr.bf16.mxu0 0
        %2373 = vmatpush1.bf16.msra.mxu0 0
        %2374 = vmatprep.subr.bf16.mxu0 0
        %2375 = vmatpush1.bf16.msra.mxu0 0
        %2376 = vmatprep.subr.bf16.mxu0 0
        %2377 = vmatpush1.bf16.msra.mxu0 0
        %2378 = vmatprep.subr.bf16.mxu0 0
        %2379 = vmatpush1.bf16.msra.mxu0 0
        %2380 = vmatprep.subr.bf16.mxu0 0
        %2381 = vmatpush1.bf16.msra.mxu0 0
        %2382 = vmatprep.subr.bf16.mxu0 0
        %2383 = vmatpush1.bf16.msra.mxu0 0
        %2384 = vmatprep.subr.bf16.mxu0 0
        %2385 = vmatpush1.bf16.msra.mxu0 0
        %2386 = vmatprep.subr.bf16.mxu0 0
        %2387 = vmatpush1.bf16.msra.mxu0 0
        %2388 = vmatprep.subr.bf16.mxu0 0
        %2389 = vmatpush1.bf16.msra.mxu0 0
        %2390 = vmatprep.subr.bf16.mxu0 0
        %2391 = vmatpush1.bf16.msra.mxu0 0
        %2392 = vmatprep.subr.bf16.mxu0 0
        %2393 = vmatpush1.bf16.msra.mxu0 0
        %2394 = vmatprep.subr.bf16.mxu0 0
        %2395 = vmatpush1.bf16.msra.mxu0 0
        %2396 = vmatprep.subr.bf16.mxu0 0
        %2397 = vmatpush1.bf16.msra.mxu0 0
        %2398 = vmatprep.subr.bf16.mxu0 0
        %2399 = vmatpush1.bf16.msra.mxu0 0
        %2400 = vmatprep.mubr.bf16.mxu0 0
        %2401 = vmatmul.mubr.bf16.gmra.mrb[0].mxu0 %v1918
        %v2402 = vpop.f32.mrb[0].mxu0
        %v2403 = vadd.f32 %v2363, %v2402
        %v2404 = vpop.f32.mrb[0].mxu0
        %v2405 = vpop.f32.mrb[0].mxu0
        %v2406 = vpop.f32.mrb[0].mxu0
        %2407 = vdwg.mxu0
        %v2408 = vmax.f32 %v2078, 0.0
        %v2409 = vmax.f32 %v2080, 0.0
        %v2410 = vmax.f32 %v2242, 0.0
        %v2411 = vmax.f32 %v2244, 0.0
        %v2412 = vmax.f32 %v2403, 0.0
        %v2413 = vpack.c.bf16 %v2408, %v2408
        %v2414 = vpack.c.bf16 %v2409, %v2409
        %v2415 = vpack.c.bf16 %v2410, %v2410
        %v2416 = vpack.c.bf16 %v2411, %v2411
        %v2417 = vpack.c.bf16 %v2412, %v2412
        %v2418 = vld [vmem:[%s3] sm:$0xf]
        %v2419 = vld [vmem:[%s3 + $0x4] sm:$0xf]
        %v2420 = vld [vmem:[%s3 + $0x8] sm:$0xf]
        %v2421 = vld [vmem:[%s3 + $0xc] sm:$0xf]
        %v2422 = vld [vmem:[%s3 + $0x10] sm:$0xf]
        %v2423 = vld [vmem:[%s3 + $0x14] sm:$0xf]
        %v2424 = vld [vmem:[%s3 + $0x18] sm:$0xf]
        %v2425 = vld [vmem:[%s3 + $0x1c] sm:$0xf]
        %v2426 = vld [vmem:[%s3 + $0x20] sm:$0xf]
        %v2427 = vld [vmem:[%s3 + $0x24] sm:$0xf]
        %v2428 = vld [vmem:[%s3 + $0x28] sm:$0xf]
        %v2429 = vld [vmem:[%s3 + $0x2c] sm:$0xf]
        %v2430 = vld [vmem:[%s3 + $0x30] sm:$0xf]
        %v2431 = vld [vmem:[%s3 + $0x34] sm:$0xf]
        %v2432 = vld [vmem:[%s3 + $0x38] sm:$0xf]
        %v2433 = vld [vmem:[%s3 + $0x3c] sm:$0xf]
        %v2434 = vld [vmem:[%s3 + $0x40] sm:$0xf]
        %v2435 = vld [vmem:[%s3 + $0x44] sm:$0xf]
        %v2436 = vld [vmem:[%s3 + $0x48] sm:$0xf]
        %v2437 = vld [vmem:[%s3 + $0x4c] sm:$0xf]
        %v2438 = vld [vmem:[%s3 + $0x50] sm:$0xf]
        %v2439 = vld [vmem:[%s3 + $0x54] sm:$0xf]
        %v2440 = vld [vmem:[%s3 + $0x58] sm:$0xf]
        %v2441 = vld [vmem:[%s3 + $0x5c] sm:$0xf]
        %v2442 = vld [vmem:[%s3 + $0x60] sm:$0xf]
        %v2443 = vld [vmem:[%s3 + $0x64] sm:$0xf]
        %v2444 = vld [vmem:[%s3 + $0x68] sm:$0xf]
        %v2445 = vld [vmem:[%s3 + $0x6c] sm:$0xf]
        %v2446 = vld [vmem:[%s3 + $0x70] sm:$0xf]
        %v2447 = vld [vmem:[%s3 + $0x74] sm:$0xf]
        %v2448 = vld [vmem:[%s3 + $0x78] sm:$0xf]
        %v2449 = vld [vmem:[%s3 + $0x7c] sm:$0xf]
        %v2450 = vld [vmem:[%s3 + $0x80] sm:$0xf]
        %v2451 = vld [vmem:[%s3 + $0x84] sm:$0xf]
        %v2452 = vld [vmem:[%s3 + $0x88] sm:$0xf]
        %v2453 = vld [vmem:[%s3 + $0x8c] sm:$0xf]
        %v2454 = vld [vmem:[%s3 + $0x90] sm:$0xf]
        %v2455 = vld [vmem:[%s3 + $0x94] sm:$0xf]
        %v2456 = vld [vmem:[%s3 + $0x98] sm:$0xf]
        %v2457 = vld [vmem:[%s3 + $0x9c] sm:$0xf]
        %v2458 = vld [vmem:[%s3 + $0xa0] sm:$0xf]
        %v2459 = vld [vmem:[%s3 + $0xa4] sm:$0xf]
        %v2460 = vld [vmem:[%s3 + $0xa8] sm:$0xf]
        %v2461 = vld [vmem:[%s3 + $0xac] sm:$0xf]
        %v2462 = vld [vmem:[%s3 + $0xb0] sm:$0xf]
        %v2463 = vld [vmem:[%s3 + $0xb4] sm:$0xf]
        %v2464 = vld [vmem:[%s3 + $0xb8] sm:$0xf]
        %v2465 = vld [vmem:[%s3 + $0xbc] sm:$0xf]
        %v2466 = vld [vmem:[%s3 + $0xc0] sm:$0xf]
        %v2467 = vld [vmem:[%s3 + $0xc4] sm:$0xf]
        %v2468 = vld [vmem:[%s3 + $0xc8] sm:$0xf]
        %v2469 = vld [vmem:[%s3 + $0xcc] sm:$0xf]
        %v2470 = vld [vmem:[%s3 + $0xd0] sm:$0xf]
        %v2471 = vld [vmem:[%s3 + $0xd4] sm:$0xf]
        %v2472 = vld [vmem:[%s3 + $0xd8] sm:$0xf]
        %v2473 = vld [vmem:[%s3 + $0xdc] sm:$0xf]
        %v2474 = vld [vmem:[%s3 + $0xe0] sm:$0xf]
        %v2475 = vld [vmem:[%s3 + $0xe4] sm:$0xf]
        %v2476 = vld [vmem:[%s3 + $0xe8] sm:$0xf]
        %v2477 = vld [vmem:[%s3 + $0xec] sm:$0xf]
        %v2478 = vld [vmem:[%s3 + $0xf0] sm:$0xf]
        %v2479 = vld [vmem:[%s3 + $0xf4] sm:$0xf]
        %v2480 = vld [vmem:[%s3 + $0xf8] sm:$0xf]
        %v2481 = vld [vmem:[%s3 + $0xfc] sm:$0xf]
        %v2482 = vld [vmem:[%s3 + $0x100] sm:$0xf]
        %v2483 = vld [vmem:[%s3 + $0x104] sm:$0xf]
        %v2484 = vld [vmem:[%s3 + $0x108] sm:$0xf]
        %v2485 = vld [vmem:[%s3 + $0x10c] sm:$0xf]
        %v2486 = vld [vmem:[%s3 + $0x110] sm:$0xf]
        %v2487 = vld [vmem:[%s3 + $0x114] sm:$0xf]
        %v2488 = vld [vmem:[%s3 + $0x118] sm:$0xf]
        %v2489 = vld [vmem:[%s3 + $0x11c] sm:$0xf]
        %v2490 = vld [vmem:[%s4] sm:$0x1]
        %v2492 = vlaneseq
        %v2493 = vshrl.u32 %v2492, 7
        %v2494 = vsub.s32 0, %v2493
        %v2495 = vrot.slane %v2490, %v2494
        %v2569 = vunpack.c.l.b16 %v2418
        %v2570 = vunpack.c.l.b16 %v2419
        %v2571 = vunpack.c.l.b16 %v2420
        %v2572 = vunpack.c.l.b16 %v2421
        %v2573 = vunpack.c.l.b16 %v2422
        %v2574 = vunpack.c.l.b16 %v2423
        %v2575 = vunpack.c.l.b16 %v2424
        %v2576 = vunpack.c.l.b16 %v2425
        %v2577 = vunpack.c.l.b16 %v2426
        %v2578 = vunpack.c.l.b16 %v2427
        %v2579 = vunpack.c.l.b16 %v2428
        %v2580 = vunpack.c.l.b16 %v2429
        %v2581 = vunpack.c.l.b16 %v2430
        %v2582 = vunpack.c.l.b16 %v2431
        %v2583 = vunpack.c.l.b16 %v2432
        %v2584 = vunpack.c.l.b16 %v2433
        %v2585 = vunpack.c.l.b16 %v2434
        %v2586 = vunpack.c.l.b16 %v2435
        %v2587 = vunpack.c.l.b16 %v2436
        %v2588 = vunpack.c.l.b16 %v2437
        %v2589 = vunpack.c.l.b16 %v2438
        %v2590 = vunpack.c.l.b16 %v2439
        %v2591 = vunpack.c.l.b16 %v2440
        %v2592 = vunpack.c.l.b16 %v2441
        %v2593 = vunpack.c.l.b16 %v2442
        %v2594 = vunpack.c.l.b16 %v2443
        %v2595 = vunpack.c.l.b16 %v2444
        %v2596 = vunpack.c.l.b16 %v2445
        %v2597 = vunpack.c.l.b16 %v2446
        %v2598 = vunpack.c.l.b16 %v2447
        %v2599 = vunpack.c.l.b16 %v2448
        %v2600 = vunpack.c.l.b16 %v2449
        %v2601 = vunpack.c.l.b16 %v2450
        %v2602 = vunpack.c.l.b16 %v2451
        %v2603 = vunpack.c.l.b16 %v2452
        %v2604 = vunpack.c.l.b16 %v2453
        %v2605 = vunpack.c.l.b16 %v2454
        %v2606 = vunpack.c.l.b16 %v2455
        %v2607 = vunpack.c.l.b16 %v2456
        %v2608 = vunpack.c.l.b16 %v2457
        %v2609 = vunpack.c.l.b16 %v2458
        %v2610 = vunpack.c.l.b16 %v2459
        %v2611 = vunpack.c.l.b16 %v2460
        %v2612 = vunpack.c.l.b16 %v2461
        %v2613 = vunpack.c.l.b16 %v2462
        %v2614 = vunpack.c.l.b16 %v2463
        %v2615 = vunpack.c.l.b16 %v2464
        %v2616 = vunpack.c.l.b16 %v2465
        %v2617 = vunpack.c.l.b16 %v2466
        %v2618 = vunpack.c.l.b16 %v2467
        %v2619 = vunpack.c.l.b16 %v2468
        %v2620 = vunpack.c.l.b16 %v2469
        %v2621 = vunpack.c.l.b16 %v2470
        %v2622 = vunpack.c.l.b16 %v2471
        %v2623 = vunpack.c.l.b16 %v2472
        %v2624 = vunpack.c.l.b16 %v2473
        %v2625 = vunpack.c.l.b16 %v2474
        %v2626 = vunpack.c.l.b16 %v2475
        %v2627 = vunpack.c.l.b16 %v2476
        %v2628 = vunpack.c.l.b16 %v2477
        %v2629 = vunpack.c.l.b16 %v2478
        %v2630 = vunpack.c.l.b16 %v2479
        %v2631 = vunpack.c.l.b16 %v2480
        %v2632 = vunpack.c.l.b16 %v2481
        %v2633 = vunpack.c.l.b16 %v2482
        %v2634 = vunpack.c.l.b16 %v2483
        %v2635 = vunpack.c.l.b16 %v2484
        %v2636 = vunpack.c.l.b16 %v2485
        %v2637 = vunpack.c.l.b16 %v2486
        %v2638 = vunpack.c.l.b16 %v2487
        %v2639 = vunpack.c.l.b16 %v2488
        %v2640 = vunpack.c.l.b16 %v2489
        %v2641 = vpack.c.b16 %v2570, %v2569
        %v2642 = vpack.c.b16 %v2572, %v2571
        %v2643 = vpack.c.b16 %v2574, %v2573
        %v2644 = vpack.c.b16 %v2576, %v2575
        %v2645 = vpack.c.b16 %v2578, %v2577
        %v2646 = vpack.c.b16 %v2580, %v2579
        %v2647 = vpack.c.b16 %v2582, %v2581
        %v2648 = vpack.c.b16 %v2584, %v2583
        %v2649 = vpack.c.b16 %v2586, %v2585
        %v2650 = vpack.c.b16 %v2588, %v2587
        %v2651 = vpack.c.b16 %v2590, %v2589
        %v2652 = vpack.c.b16 %v2592, %v2591
        %v2653 = vpack.c.b16 %v2594, %v2593
        %v2654 = vpack.c.b16 %v2596, %v2595
        %v2655 = vpack.c.b16 %v2598, %v2597
        %v2656 = vpack.c.b16 %v2600, %v2599
        %v2657 = vpack.c.b16 %v2602, %v2601
        %v2658 = vpack.c.b16 %v2604, %v2603
        %v2659 = vpack.c.b16 %v2606, %v2605
        %v2660 = vpack.c.b16 %v2608, %v2607
        %v2661 = vpack.c.b16 %v2610, %v2609
        %v2662 = vpack.c.b16 %v2612, %v2611
        %v2663 = vpack.c.b16 %v2614, %v2613
        %v2664 = vpack.c.b16 %v2616, %v2615
        %v2665 = vpack.c.b16 %v2618, %v2617
        %v2666 = vpack.c.b16 %v2620, %v2619
        %v2667 = vpack.c.b16 %v2622, %v2621
        %v2668 = vpack.c.b16 %v2624, %v2623
        %v2669 = vpack.c.b16 %v2626, %v2625
        %v2670 = vpack.c.b16 %v2628, %v2627
        %v2671 = vpack.c.b16 %v2630, %v2629
        %v2672 = vpack.c.b16 %v2632, %v2631
        %v2673 = vpack.c.b16 %v2634, %v2633
        %v2674 = vpack.c.b16 %v2636, %v2635
        %v2675 = vpack.c.b16 %v2638, %v2637
        %v2676 = vpack.c.b16 %v2640, %v2639
        %vm2713 = vcmask 523264
        %v2715 = vsel %vm2713, %v2417, 0
        %2717 = vmatprep.subr.bf16.mxu0 0
        %2718 = vmatpush1.bf16.msra.mxu0 %v2641
        %2719 = vmatprep.subr.bf16.mxu0 0
        %2720 = vmatpush1.bf16.msra.mxu0 %v2642
        %2721 = vmatprep.subr.bf16.mxu0 0
        %2722 = vmatpush1.bf16.msra.mxu0 %v2643
        %2723 = vmatprep.subr.bf16.mxu0 0
        %2724 = vmatpush1.bf16.msra.mxu0 %v2644
        %2725 = vmatprep.subr.bf16.mxu0 0
        %2726 = vmatpush1.bf16.msra.mxu0 %v2645
        %2727 = vmatprep.subr.bf16.mxu0 0
        %2728 = vmatpush1.bf16.msra.mxu0 %v2646
        %2729 = vmatprep.subr.bf16.mxu0 0
        %2730 = vmatpush1.bf16.msra.mxu0 %v2647
        %2731 = vmatprep.subr.bf16.mxu0 0
        %2732 = vmatpush1.bf16.msra.mxu0 %v2648
        %2733 = vmatprep.subr.bf16.mxu0 0
        %2734 = vmatpush1.bf16.msra.mxu0 %v2649
        %2735 = vmatprep.subr.bf16.mxu0 0
        %2736 = vmatpush1.bf16.msra.mxu0 %v2650
        %2737 = vmatprep.subr.bf16.mxu0 0
        %2738 = vmatpush1.bf16.msra.mxu0 %v2651
        %2739 = vmatprep.subr.bf16.mxu0 0
        %2740 = vmatpush1.bf16.msra.mxu0 %v2652
        %2741 = vmatprep.subr.bf16.mxu0 0
        %2742 = vmatpush1.bf16.msra.mxu0 %v2653
        %2743 = vmatprep.subr.bf16.mxu0 0
        %2744 = vmatpush1.bf16.msra.mxu0 %v2654
        %2745 = vmatprep.subr.bf16.mxu0 0
        %2746 = vmatpush1.bf16.msra.mxu0 %v2655
        %2747 = vmatprep.subr.bf16.mxu0 0
        %2748 = vmatpush1.bf16.msra.mxu0 %v2656
        %2749 = vmatprep.mubr.bf16.mxu0 %v2414
        %2750 = vmatmul.mubr.bf16.gmra.mrb[0].mxu0 %v2413
        %v2751 = vpop.f32.mrb[0].mxu0
        %v2752 = vadd.f32 %v2495, %v2751
        %v2753 = vpop.f32.mrb[0].mxu0
        %v2754 = vpop.f32.mrb[0].mxu0
        %v2755 = vpop.f32.mrb[0].mxu0
        %2756 = vdwg.mxu0
        %2757 = vmatprep.subr.bf16.mxu0 0
        %2758 = vmatpush1.bf16.msra.mxu0 %v2657
        %2759 = vmatprep.subr.bf16.mxu0 0
        %2760 = vmatpush1.bf16.msra.mxu0 %v2658
        %2761 = vmatprep.subr.bf16.mxu0 0
        %2762 = vmatpush1.bf16.msra.mxu0 %v2659
        %2763 = vmatprep.subr.bf16.mxu0 0
        %2764 = vmatpush1.bf16.msra.mxu0 %v2660
        %2765 = vmatprep.subr.bf16.mxu0 0
        %2766 = vmatpush1.bf16.msra.mxu0 %v2661
        %2767 = vmatprep.subr.bf16.mxu0 0
        %2768 = vmatpush1.bf16.msra.mxu0 %v2662
        %2769 = vmatprep.subr.bf16.mxu0 0
        %2770 = vmatpush1.bf16.msra.mxu0 %v2663
        %2771 = vmatprep.subr.bf16.mxu0 0
        %2772 = vmatpush1.bf16.msra.mxu0 %v2664
        %2773 = vmatprep.subr.bf16.mxu0 0
        %2774 = vmatpush1.bf16.msra.mxu0 %v2665
        %2775 = vmatprep.subr.bf16.mxu0 0
        %2776 = vmatpush1.bf16.msra.mxu0 %v2666
        %2777 = vmatprep.subr.bf16.mxu0 0
        %2778 = vmatpush1.bf16.msra.mxu0 %v2667
        %2779 = vmatprep.subr.bf16.mxu0 0
        %2780 = vmatpush1.bf16.msra.mxu0 %v2668
        %2781 = vmatprep.subr.bf16.mxu0 0
        %2782 = vmatpush1.bf16.msra.mxu0 %v2669
        %2783 = vmatprep.subr.bf16.mxu0 0
        %2784 = vmatpush1.bf16.msra.mxu0 %v2670
        %2785 = vmatprep.subr.bf16.mxu0 0
        %2786 = vmatpush1.bf16.msra.mxu0 %v2671
        %2787 = vmatprep.subr.bf16.mxu0 0
        %2788 = vmatpush1.bf16.msra.mxu0 %v2672
        %2789 = vmatprep.mubr.bf16.mxu0 %v2416
        %2790 = vmatmul.mubr.bf16.gmra.mrb[0].mxu0 %v2415
        %v2791 = vpop.f32.mrb[0].mxu0
        %v2792 = vadd.f32 %v2752, %v2791
        %v2793 = vpop.f32.mrb[0].mxu0
        %v2794 = vpop.f32.mrb[0].mxu0
        %v2795 = vpop.f32.mrb[0].mxu0
        %2796 = vdwg.mxu0
        %2797 = vmatprep.subr.bf16.mxu0 0
        %2798 = vmatpush1.bf16.msra.mxu0 %v2673
        %2799 = vmatprep.subr.bf16.mxu0 0
        %2800 = vmatpush1.bf16.msra.mxu0 %v2674
        %2801 = vmatprep.subr.bf16.mxu0 0
        %2802 = vmatpush1.bf16.msra.mxu0 %v2675
        %2803 = vmatprep.subr.bf16.mxu0 0
        %2804 = vmatpush1.bf16.msra.mxu0 %v2676
        %2805 = vmatprep.subr.bf16.mxu0 0
        %2806 = vmatpush1.bf16.msra.mxu0 0
        %2807 = vmatprep.subr.bf16.mxu0 0
        %2808 = vmatpush1.bf16.msra.mxu0 0
        %2809 = vmatprep.subr.bf16.mxu0 0
        %2810 = vmatpush1.bf16.msra.mxu0 0
        %2811 = vmatprep.subr.bf16.mxu0 0
        %2812 = vmatpush1.bf16.msra.mxu0 0
        %2813 = vmatprep.subr.bf16.mxu0 0
        %2814 = vmatpush1.bf16.msra.mxu0 0
        %2815 = vmatprep.subr.bf16.mxu0 0
        %2816 = vmatpush1.bf16.msra.mxu0 0
        %2817 = vmatprep.subr.bf16.mxu0 0
        %2818 = vmatpush1.bf16.msra.mxu0 0
        %2819 = vmatprep.subr.bf16.mxu0 0
        %2820 = vmatpush1.bf16.msra.mxu0 0
        %2821 = vmatprep.subr.bf16.mxu0 0
        %2822 = vmatpush1.bf16.msra.mxu0 0
        %2823 = vmatprep.subr.bf16.mxu0 0
        %2824 = vmatpush1.bf16.msra.mxu0 0
        %2825 = vmatprep.subr.bf16.mxu0 0
        %2826 = vmatpush1.bf16.msra.mxu0 0
        %2827 = vmatprep.subr.bf16.mxu0 0
        %2828 = vmatpush1.bf16.msra.mxu0 0
        %2829 = vmatprep.mubr.bf16.mxu0 0
        %2830 = vmatmul.mubr.bf16.gmra.mrb[0].mxu0 %v2715
        %v2831 = vpop.f32.mrb[0].mxu0
        %v2832 = vadd.f32 %v2792, %v2831
        %v2833 = vpop.f32.mrb[0].mxu0
        %v2834 = vpop.f32.mrb[0].mxu0
        %v2835 = vpop.f32.mrb[0].mxu0
        %2836 = vdwg.mxu0
        %v2837 = vmax.f32 %v2832, 0.0
        %v2838 = vpack.c.bf16 %v2837, %v2837
        %v2839 = vld [vmem:[%s5] sm:$0xf]
        %v2840 = vld [vmem:[%s5 + $0x4] sm:$0xf]
        %v2841 = vld [vmem:[%s5 + $0x8] sm:$0xf]
        %v2842 = vld [vmem:[%s5 + $0xc] sm:$0xf]
        %v2843 = vld [vmem:[%s5 + $0x10] sm:$0xf]
        %v2844 = vld [vmem:[%s5 + $0x14] sm:$0xf]
        %v2845 = vld [vmem:[%s5 + $0x18] sm:$0xf]
        %v2846 = vld [vmem:[%s5 + $0x1c] sm:$0xf]
        %v2847 = vld [vmem:[%s6] sm:$0x1]
        %v2849 = vlaneseq
        %v2850 = vshrl.u32 %v2849, 7
        %v2851 = vsub.s32 0, %v2850
        %v2852 = vrot.slane %v2847, %v2851
        %v2862 = vunpack.c.l.b16 %v2839
        %v2863 = vunpack.c.l.b16 %v2840
        %v2864 = vunpack.c.l.b16 %v2841
        %v2865 = vunpack.c.l.b16 %v2842
        %v2866 = vunpack.c.l.b16 %v2843
        %v2867 = vunpack.c.l.b16 %v2844
        %v2868 = vunpack.c.l.b16 %v2845
        %v2869 = vunpack.c.l.b16 %v2846
        %v2870 = vpack.c.b16 %v2863, %v2862
        %v2871 = vpack.c.b16 %v2865, %v2864
        %v2872 = vpack.c.b16 %v2867, %v2866
        %v2873 = vpack.c.b16 %v2869, %v2868
        %v2879 = vsel %vm2713, %v2838, 0
        %2881 = vmatprep.subr.bf16.mxu0 0
        %2882 = vmatpush1.bf16.msra.mxu0 %v2870
        %2883 = vmatprep.subr.bf16.mxu0 0
        %2884 = vmatpush1.bf16.msra.mxu0 %v2871
        %2885 = vmatprep.subr.bf16.mxu0 0
        %2886 = vmatpush1.bf16.msra.mxu0 %v2872
        %2887 = vmatprep.subr.bf16.mxu0 0
        %2888 = vmatpush1.bf16.msra.mxu0 %v2873
        %2889 = vmatprep.subr.bf16.mxu0 0
        %2890 = vmatpush1.bf16.msra.mxu0 0
        %2891 = vmatprep.subr.bf16.mxu0 0
        %2892 = vmatpush1.bf16.msra.mxu0 0
        %2893 = vmatprep.subr.bf16.mxu0 0
        %2894 = vmatpush1.bf16.msra.mxu0 0
        %2895 = vmatprep.subr.bf16.mxu0 0
        %2896 = vmatpush1.bf16.msra.mxu0 0
        %2897 = vmatprep.subr.bf16.mxu0 0
        %2898 = vmatpush1.bf16.msra.mxu0 0
        %2899 = vmatprep.subr.bf16.mxu0 0
        %2900 = vmatpush1.bf16.msra.mxu0 0
        %2901 = vmatprep.subr.bf16.mxu0 0
        %2902 = vmatpush1.bf16.msra.mxu0 0
        %2903 = vmatprep.subr.bf16.mxu0 0
        %2904 = vmatpush1.bf16.msra.mxu0 0
        %2905 = vmatprep.subr.bf16.mxu0 0
        %2906 = vmatpush1.bf16.msra.mxu0 0
        %2907 = vmatprep.subr.bf16.mxu0 0
        %2908 = vmatpush1.bf16.msra.mxu0 0
        %2909 = vmatprep.subr.bf16.mxu0 0
        %2910 = vmatpush1.bf16.msra.mxu0 0
        %2911 = vmatprep.subr.bf16.mxu0 0
        %2912 = vmatpush1.bf16.msra.mxu0 0
        %2913 = vmatprep.mubr.bf16.mxu0 0
        %2914 = vmatmul.mubr.bf16.gmra.mrb[0].mxu0 %v2879
        %v2915 = vpop.f32.mrb[0].mxu0
        %v2916 = vadd.f32 %v2852, %v2915
        %v2917 = vpop.f32.mrb[0].mxu0
        %v2918 = vpop.f32.mrb[0].mxu0
        %v2919 = vpop.f32.mrb[0].mxu0
        %2920 = vdwg.mxu0
        %2921 = vst [vmem:[%s291] sm:$0xff] %v2916
        %p2922 = scmp.lt.s32.totalorder %s19, 3
        %s2923 = scalar_select %p2922, %s19, 3
        %s2924 = smul.addr %s2923, 8
        %s2925 = scalar_lea.vmem %s7, %s2924
        // Predicated region
        $region53: #{baseline_forward.1} parent=47 // pred_check
          %p2926 = pneg %p189
        $region54: #{baseline_forward.1} parent=47 // pred_check_branch
          %2928 = sbr.rel (%p2926) target = $region56
        $region55: #{baseline_forward.1} parent=47 // pred_region
          _
        $region56: #{baseline_forward.1} parent=47 // pred_fallthru
          _
      $region48: #{baseline_forward.1} parent=5 // pred_fallthru
        _
      %p2929 = scmp.le.s32.totalorder 2, %s14
      // Predicated region
      $region57: #{baseline_forward.1} parent=5 // pred_check
        %p2930 = pneg %p2929
      $region58: #{baseline_forward.1} parent=5 // pred_check_branch
        %2932 = sbr.rel (%p2930) target = $region60
      $region59: #{baseline_forward.1} parent=5 // pred_region
        %s2933 = ssub.s32 %s14, 2
        // Predicated region
        $region61: #{baseline_forward.1} parent=59 // pred_check
          %p2934 = pneg %p195
        $region62: #{baseline_forward.1} parent=59 // pred_check_branch
          %2936 = sbr.rel (%p2934) target = $region64
        $region63: #{baseline_forward.1} parent=59 // pred_region
          %p2937 = scmp.lt.s32.totalorder %s20, 3
          %s2938 = scalar_select %p2937, %s20, 3
          %s2939 = smul.addr %s2938, 8
          %s2940 = scalar_lea.vmem %s7, %s2939
        $region64: #{baseline_forward.1} parent=59 // pred_fallthru
          _
      $region60: #{baseline_forward.1} parent=5 // pred_fallthru
        _
    $region6: #{baseline_forward.1} parent=1 // loop_footer
      %s18 = sadd.s32 1, %s14
    $region7: #{baseline_forward.1} parent=1 // loop_footer_branch
      %13 = sbr.rel target = $region3
    $region8: #{baseline_forward.1} parent=1 // loop_exit
      _
    %2941 = vsyncpa [#allocation3], 1
    %s2942 = scalar_lea.sflag [#allocation3], 1
    %2943 = vsyncpa %s2942, 1

</llo_original>
